<compile_context>
chip_gen: v7x
topology: tpu7x:2x2x1
jax: 0.10.0
libtpu: 0.0.40
codegen_flags: <defaults>
</compile_context>

<pallas_src>
import jax
import jax.numpy as jnp
from jax.experimental import pallas as pl
from jax.experimental.pallas import tpu as pltpu


# ---------------------------------------------------------------------------
# Weight slab layout: bf16, (720, 256).  Row offsets are multiples of 16
# (bf16 sublane tile) so every slice is tile-aligned.
# ---------------------------------------------------------------------------
R_W_IN = 0      # rows   0:8    cols 0:128 : input_layer.weight^T   (8, 128)
R_W_H1 = 16     # rows  16:144  cols 0:128 : hidden_1.weight^T      (128, 128)
R_GRU0 = 144    # rows 144:400  block-diag : GRU l0 [Wih^T | Whh^T] (256, 256)
R_GRU1 = 400    # rows 400:656  block-diag : GRU l1 [Wih^T | Whh^T] (256, 256)
R_W_H2 = 656    # rows 656:688  cols 0:31  : hidden_2.weight^T      (32, 31)
R_W_AV = 688    # rows 688:720  cols 0:6   : [action|value].weight^T(31, 6)
N_W_ROWS = 720

# Bias slab: f32, (8, 256).
B_IN, B_H1, B_GRU0, B_GRU1, B_H2, B_AV = 0, 1, 2, 3, 4, 5
# GRU bias rows: lanes 0:96 = bias_ih, lanes 128:224 = bias_hh (matches the
# block-diagonal weight output layout: gi in lanes 0:96, gh in lanes 128:224).


def _sigmoid(x):
    # exp + approx reciprocal both map to the EUP slot (keeps the VALU free).
    return pl.reciprocal(1.0 + jnp.exp(-x), approx=True)


def _rollout_kernel(x_ref, w_ref, b_ref, h0_ref, step_ref, hid_ref, h_scr):
    f32, bf16 = jnp.float32, jnp.bfloat16
    t = pl.program_id(0)

    # Load the initial hidden state into the VMEM carry once.
    @pl.when(t == 0)
    def _():
        h_scr[...] = h0_ref[...]

    x = x_ref[0:1, 0:8].astype(bf16)        # (1, 8)
    h0_row = h_scr[0:1, :]                  # (1, 128): h_prev layer 0 in lanes 0:32
    h1_row = h_scr[1:2, :]                  # (1, 128): h_prev layer 1 in lanes 0:32
    h0_prev = h0_row[:, 0:32]
    h1_prev = h1_row[:, 0:32]

    # input_layer + sigmoid, hidden_1 + tanh (128-lane dense activations)
    h = _sigmoid(jnp.dot(x, w_ref[R_W_IN:R_W_IN + 8, 0:128],
                         preferred_element_type=f32) + b_ref[B_IN:B_IN + 1, 0:128])
    h = jnp.tanh(jnp.dot(h.astype(bf16), w_ref[R_W_H1:R_W_H1 + 128, 0:128],
                         preferred_element_type=f32) + b_ref[B_H1:B_H1 + 1, 0:128])

    def gru_cell(lhs_a, lhs_b, w_rows, bias_row, h_prev):
        # ONE block-diagonal matmul per cell: gi -> lanes 0:96, gh -> 128:224.
        # Zero weight rows (32:128, 160:256) make lane padding content irrelevant.
        cat = jnp.concatenate([lhs_a, lhs_b], axis=1).astype(bf16)          # (1, 256)
        g = jnp.dot(cat, w_rows, preferred_element_type=f32) + bias_row     # (1, 256)
        r = _sigmoid(g[:, 0:32] + g[:, 128:160])
        z = _sigmoid(g[:, 32:64] + g[:, 160:192])
        n = jnp.tanh(g[:, 64:96] + r * g[:, 192:224])
        return (1.0 - z) * n + z * h_prev                                   # (1, 32)

    h_l0 = gru_cell(h, h0_row, w_ref[R_GRU0:R_GRU0 + 256, :],
                    b_ref[B_GRU0:B_GRU0 + 1, :], h0_prev)
    h_scr[0:1, 0:32] = h_l0                 # update carry (also pads lanes 32: with zeros)
    h_l0_row = h_scr[0:1, :]                # (1, 128) padded view of h_l0

    h_l1 = gru_cell(h_l0_row, h1_row, w_ref[R_GRU1:R_GRU1 + 256, :],
                    b_ref[B_GRU1:B_GRU1 + 1, :], h1_prev)
    h_scr[1:2, 0:32] = h_l1                 # update carry

    # hidden_2 + relu (padded lanes 31: stay exactly zero)
    y = jnp.maximum(
        jnp.dot(h_l1.astype(bf16), w_ref[R_W_H2:R_W_H2 + 32, 0:128],
                preferred_element_type=f32) + b_ref[B_H2:B_H2 + 1, 0:128], 0.0)

    # fused heads: lanes 0:5 = action scores, lane 5 = state value
    av = jnp.dot(y[:, 0:32].astype(bf16), w_ref[R_W_AV:R_W_AV + 32, 0:128],
                 preferred_element_type=f32) + b_ref[B_AV:B_AV + 1, 0:128]

    # masked softmax over the 5 action lanes, normalization via EUP reciprocal
    lane = jax.lax.broadcasted_iota(jnp.int32, (1, 128), 1)
    amask = lane < 5
    scores = jnp.where(amask, av, jnp.float32(-1e30))
    m = jnp.max(scores, axis=-1, keepdims=True)
    e = jnp.where(amask, jnp.exp(scores - m), 0.0)
    denom = jnp.sum(e, axis=-1, keepdims=True)
    probs = e * pl.reciprocal(denom, approx=True)
    row0 = probs + jnp.where(lane == 5, av, 0.0)      # value placed at lane 5

    # single unmasked full-tile store per step (one vreg)
    step_ref[...] = jnp.broadcast_to(row0, (8, 128))

    # final hidden state written back once, at the last rollout step
    @pl.when(t == pl.num_programs(0) - 1)
    def _():
        hid_ref[...] = h_scr[...]


# ---------------------------------------------------------------------------
# Host-side packing / wrappers
# ---------------------------------------------------------------------------
def pack_params(p):
    """Pack PyTorch-layout params into (weight_slab bf16 (720,256), bias_slab f32 (8,256))."""
    w = jnp.zeros((N_W_ROWS, 256), jnp.float32)
    w = w.at[R_W_IN:R_W_IN + 8, 0:128].set(p["input_layer.weight"].T)
    w = w.at[R_W_H1:R_W_H1 + 128, 0:128].set(p["hidden_1.weight"].T)
    # GRU layer 0, block-diagonal: rows 0:128 <- Wih^T (cols 0:96), rows 128:160 <- Whh^T (cols 128:224)
    w = w.at[R_GRU0:R_GRU0 + 128, 0:96].set(p["rnn.weight_ih_l0"].T)
    w = w.at[R_GRU0 + 128:R_GRU0 + 160, 128:224].set(p["rnn.weight_hh_l0"].T)
    # GRU layer 1, block-diagonal: rows 0:32 <- Wih^T, rows 128:160 <- Whh^T
    w = w.at[R_GRU1:R_GRU1 + 32, 0:96].set(p["rnn.weight_ih_l1"].T)
    w = w.at[R_GRU1 + 128:R_GRU1 + 160, 128:224].set(p["rnn.weight_hh_l1"].T)
    w = w.at[R_W_H2:R_W_H2 + 32, 0:31].set(p["hidden_2.weight"].T)
    w_av = jnp.concatenate([p["action_head.weight"].T, p["value_head.weight"].T], axis=1)  # (31, 6)
    w = w.at[R_W_AV:R_W_AV + 31, 0:6].set(w_av)
    w = w.astype(jnp.bfloat16)

    b = jnp.zeros((8, 256), jnp.float32)
    b = b.at[B_IN, 0:128].set(p["input_layer.bias"])
    b = b.at[B_H1, 0:128].set(p["hidden_1.bias"])
    b = b.at[B_GRU0, 0:96].set(p["rnn.bias_ih_l0"])
    b = b.at[B_GRU0, 128:224].set(p["rnn.bias_hh_l0"])
    b = b.at[B_GRU1, 0:96].set(p["rnn.bias_ih_l1"])
    b = b.at[B_GRU1, 128:224].set(p["rnn.bias_hh_l1"])
    b = b.at[B_H2, 0:31].set(p["hidden_2.bias"])
    b = b.at[B_AV, 0:6].set(jnp.concatenate([p["action_head.bias"], p["value_head.bias"]]))
    return w, b


@jax.jit
def policy_rollout(x_traj, w_slab, b_slab, hidden0):
    """x_traj: (T, 8); slabs from pack_params; hidden0: (2, 1, 32).

    Runs T module-forward steps in ONE pallas_call; the hidden state is
    carried in VMEM across steps.  Returns (probs (T,5), values (T,1),
    final hidden (2,1,32))."""
    T = x_traj.shape[0]
    x_slab = (jnp.zeros((T, 8, 128), jnp.float32)
              .at[:, 0, 0:8].set(x_traj.astype(jnp.float32))
              .reshape(T * 8, 128))
    h0 = jnp.zeros((8, 128), jnp.float32)
    h0 = h0.at[0, 0:32].set(hidden0[0, 0].astype(jnp.float32))
    h0 = h0.at[1, 0:32].set(hidden0[1, 0].astype(jnp.float32))

    step_out, hid_out = pl.pallas_call(
        _rollout_kernel,
        out_shape=(jax.ShapeDtypeStruct((T * 8, 128), jnp.float32),
                   jax.ShapeDtypeStruct((8, 128), jnp.float32)),
        grid_spec=pltpu.PrefetchScalarGridSpec(
            num_scalar_prefetch=0,
            grid=(T,),
            in_specs=[
                pl.BlockSpec((8, 128), lambda t: (t, 0)),            # x_t slab
                pl.BlockSpec((N_W_ROWS, 256), lambda t: (0, 0)),     # weights (VMEM-resident)
                pl.BlockSpec((8, 256), lambda t: (0, 0)),            # f32 biases (resident)
                pl.BlockSpec((8, 128), lambda t: (0, 0)),            # initial hidden
            ],
            out_specs=[
                pl.BlockSpec((8, 128), lambda t: (t, 0)),            # per-step probs/value
                pl.BlockSpec((8, 128), lambda t: (0, 0)),            # final hidden
            ],
            scratch_shapes=[pltpu.VMEM((8, 128), jnp.float32)],      # hidden carry
        ),
        compiler_params=pltpu.CompilerParams(
            dimension_semantics=("arbitrary",)),                     # recurrence axis
    )(x_slab, w_slab, b_slab, h0)

    step_out = step_out.reshape(T, 8, 128)
    probs = step_out[:, 0, 0:5]
    values = step_out[:, 0, 5:6]
    hnew = jnp.stack([hid_out[0, 0:32], hid_out[1, 0:32]])[:, None, :]
    return probs, values, hnew


def policy_forward(x, w_slab, b_slab, hidden):
    """Single-step forward (== original nn.Module.forward)."""
    probs, values, hnew = policy_rollout(x[None, :], w_slab, b_slab, hidden)
    return probs[0], values[0], hnew


# ---------------------------------------------------------------------------
# Deterministic PyTorch-style init (uniform +-1/sqrt(fan)) in PyTorch layouts
# ---------------------------------------------------------------------------
def _uniform(key, shape, bound):
    return jax.random.uniform(key, shape, jnp.float32, minval=-bound, maxval=bound)


def init_params(key):
    keys = iter(jax.random.split(key, 24))
    p = {}
    b = 1.0 / (8.0 ** 0.5)
    p["input_layer.weight"] = _uniform(next(keys), (128, 8), b)
    p["input_layer.bias"] = _uniform(next(keys), (128,), b)
    b = 1.0 / (128.0 ** 0.5)
    p["hidden_1.weight"] = _uniform(next(keys), (128, 128), b)
    p["hidden_1.bias"] = _uniform(next(keys), (128,), b)
    gb = 1.0 / (32.0 ** 0.5)
    p["rnn.weight_ih_l0"] = _uniform(next(keys), (96, 128), gb)
    p["rnn.weight_hh_l0"] = _uniform(next(keys), (96, 32), gb)
    p["rnn.bias_ih_l0"] = _uniform(next(keys), (96,), gb)
    p["rnn.bias_hh_l0"] = _uniform(next(keys), (96,), gb)
    p["rnn.weight_ih_l1"] = _uniform(next(keys), (96, 32), gb)
    p["rnn.weight_hh_l1"] = _uniform(next(keys), (96, 32), gb)
    p["rnn.bias_ih_l1"] = _uniform(next(keys), (96,), gb)
    p["rnn.bias_hh_l1"] = _uniform(next(keys), (96,), gb)
    b = 1.0 / (32.0 ** 0.5)
    p["hidden_2.weight"] = _uniform(next(keys), (31, 32), b)
    p["hidden_2.bias"] = _uniform(next(keys), (31,), b)
    b = 1.0 / (31.0 ** 0.5)
    p["action_head.weight"] = _uniform(next(keys), (5, 31), b)
    p["action_head.bias"] = _uniform(next(keys), (5,), b)
    p["value_head.weight"] = _uniform(next(keys), (1, 31), b)
    p["value_head.bias"] = _uniform(next(keys), (1,), b)
    return p


def _reference_forward(x, p, hidden):
    """Pure-JAX reference with PyTorch semantics (for correctness check)."""
    sig = lambda v: 1.0 / (1.0 + jnp.exp(-v))
    h = sig(p["input_layer.weight"] @ x + p["input_layer.bias"])
    h = jnp.tanh(p["hidden_1.weight"] @ h + p["hidden_1.bias"])

    def cell(inp, hp, wih, whh, bih, bhh):
        gi = wih @ inp + bih
        gh = whh @ hp + bhh
        r = sig(gi[0:32] + gh[0:32])
        z = sig(gi[32:64] + gh[32:64])
        n = jnp.tanh(gi[64:96] + r * gh[64:96])
        return (1.0 - z) * n + z * hp

    h0 = cell(h, hidden[0, 0], p["rnn.weight_ih_l0"], p["rnn.weight_hh_l0"],
              p["rnn.bias_ih_l0"], p["rnn.bias_hh_l0"])
    h1 = cell(h0, hidden[1, 0], p["rnn.weight_ih_l1"], p["rnn.weight_hh_l1"],
              p["rnn.bias_ih_l1"], p["rnn.bias_hh_l1"])
    y = jnp.maximum(p["hidden_2.weight"] @ h1 + p["hidden_2.bias"], 0.0)
    a = p["action_head.weight"] @ y + p["action_head.bias"]
    v = p["value_head.weight"] @ y + p["value_head.bias"]
    return jax.nn.softmax(a), v, jnp.stack([h0, h1])[:, None, :]


def _reference_rollout(x_traj, p, hidden):
    probs, vals = [], []
    h = hidden
    for t in range(x_traj.shape[0]):
        pr, v, h = _reference_forward(x_traj[t], p, h)
        probs.append(pr)
        vals.append(v)
    return jnp.stack(probs), jnp.stack(vals), h


if __name__ == "__main__":
    key = jax.random.PRNGKey(0)
    pkey, xkey = jax.random.split(key)

    params = init_params(pkey)
    w_slab, b_slab = pack_params(params)          # one-time packing
    hidden = jnp.zeros((2, 1, 32), jnp.float32)   # reset_hidden()

    T = 8
    x_traj = jax.random.normal(xkey, (T, 8), jnp.float32)

    # T-step rollout in a single pallas_call (hidden carried in VMEM scratch)
    probs, values, hnew = policy_rollout(x_traj, w_slab, b_slab, hidden)
    jax.block_until_ready((probs, values, hnew))

    assert probs.shape == (T, 5) and values.shape == (T, 1) and hnew.shape == (2, 1, 32)
    assert bool(jnp.isfinite(probs).all()) and bool(jnp.isfinite(values).all())
    assert bool(jnp.isfinite(hnew).all())
    assert bool(jnp.all(jnp.abs(probs.sum(-1) - 1.0) < 5e-3))   # approx reciprocal in softmax

    # correctness vs pure-JAX reference (weights rounded to bf16 to match the
    # kernel's bf16 matmul operands; biases / gate math stay f32)
    pq = {k: (v.astype(jnp.bfloat16).astype(jnp.float32) if "weight" in k else v)
          for k, v in params.items()}
    rp, rv, rh = _reference_rollout(x_traj, pq, hidden)
    assert bool(jnp.allclose(probs, rp, atol=2e-2, rtol=2e-2))
    assert bool(jnp.allclose(values, rv, atol=2e-2, rtol=2e-2))
    assert bool(jnp.allclose(hnew, rh, atol=2e-2, rtol=2e-2))

    # single-step path (== original module forward), feeding hidden recurrently
    p1, v1, h1 = policy_forward(x_traj[0], w_slab, b_slab, hidden)
    jax.block_until_ready((p1, v1, h1))
    rp1, rv1, rh1 = _reference_forward(x_traj[0], pq, hidden)
    assert p1.shape == (5,) and v1.shape == (1,) and h1.shape == (2, 1, 32)
    assert bool(jnp.allclose(p1, rp1, atol=2e-2, rtol=2e-2))
    assert bool(jnp.allclose(v1, rv1, atol=2e-2, rtol=2e-2))
    assert bool(jnp.allclose(h1, rh1, atol=2e-2, rtol=2e-2))

    print("KERNEL_OK")
</pallas_src>

<mosaic_0001>
module attributes {stable_mosaic.version = 11 : i64} {
  func.func @_rollout_kernel(%arg0: i32, %arg1: memref<8x128xf32, #tpu.memory_space<vmem>>, %arg2: memref<720x256xbf16, #tpu.memory_space<vmem>>, %arg3: memref<8x256xf32, #tpu.memory_space<vmem>>, %arg4: memref<8x128xf32, #tpu.memory_space<vmem>>, %arg5: memref<8x128xf32, #tpu.memory_space<vmem>>, %arg6: memref<8x128xf32, #tpu.memory_space<vmem>>, %arg7: memref<8x128xf32, #tpu.memory_space<vmem>>) attributes {dimension_semantics = [#tpu.dimension_semantics<arbitrary>], iteration_bounds = array<i64: 8>, scalar_prefetch = 0 : i64, scratch_operands = 1 : i64, tpu.core_type = #tpu.core_type<tc>, window_params = [{transform_indices = @transform_0, window_bounds = array<i64: 8, 128>}, {pipeline_mode = #tpu.pipeline_mode<synchronous>, transform_indices = @transform_1, window_bounds = array<i64: 720, 256>}, {pipeline_mode = #tpu.pipeline_mode<synchronous>, transform_indices = @transform_2, window_bounds = array<i64: 8, 256>}, {pipeline_mode = #tpu.pipeline_mode<synchronous>, transform_indices = @transform_3, window_bounds = array<i64: 8, 128>}, {transform_indices = @transform_4, window_bounds = array<i64: 8, 128>}, {pipeline_mode = #tpu.pipeline_mode<synchronous>, transform_indices = @transform_5, window_bounds = array<i64: 8, 128>}]} {
    %c0_i32 = arith.constant 0 : i32
    %0 = arith.cmpi eq, %arg0, %c0_i32 : i32
    %1 = arith.extui %0 : i1 to i32
    %c0_i32_0 = arith.constant 0 : i32
    %2 = arith.cmpi ne, %1, %c0_i32_0 : i32
    scf.if %2 {
      %c0_53 = arith.constant 0 : index
      %c0_54 = arith.constant 0 : index
      %137 = vector.load %arg4[%c0_53, %c0_54] : memref<8x128xf32, #tpu.memory_space<vmem>>, vector<8x128xf32>
      %c0_55 = arith.constant 0 : index
      %c0_56 = arith.constant 0 : index
      %138 = vector.load %arg7[%c0_55, %c0_56] : memref<8x128xf32, #tpu.memory_space<vmem>>, vector<8x128xf32>
      tpu.vector_store %arg7[%c0_55, %c0_56], %137 {strides = array<i32>} : memref<8x128xf32, #tpu.memory_space<vmem>>, vector<8x128xf32>,
    } else {
    }
    %c0 = arith.constant 0 : index
    %c0_1 = arith.constant 0 : index
    %3 = vector.load %arg1[%c0, %c0_1] : memref<8x128xf32, #tpu.memory_space<vmem>>, vector<1x8xf32>
    %4 = arith.truncf %3 : vector<1x8xf32> to vector<1x8xbf16>
    %c0_2 = arith.constant 0 : index
    %c0_3 = arith.constant 0 : index
    %5 = vector.load %arg7[%c0_2, %c0_3] : memref<8x128xf32, #tpu.memory_space<vmem>>, vector<1x128xf32>
    %c1 = arith.constant 1 : index
    %c0_4 = arith.constant 0 : index
    %6 = vector.load %arg7[%c1, %c0_4] : memref<8x128xf32, #tpu.memory_space<vmem>>, vector<1x128xf32>
    %7 = vector.extract_strided_slice %5 {offsets = [0, 0], sizes = [1, 32], strides = [1, 1]} : vector<1x128xf32> to vector<1x32xf32>
    %8 = vector.extract_strided_slice %6 {offsets = [0, 0], sizes = [1, 32], strides = [1, 1]} : vector<1x128xf32> to vector<1x32xf32>
    %c0_5 = arith.constant 0 : index
    %c0_6 = arith.constant 0 : index
    %9 = vector.load %arg2[%c0_5, %c0_6] : memref<720x256xbf16, #tpu.memory_space<vmem>>, vector<8x128xbf16>
    %cst = arith.constant dense<0.000000e+00> : vector<1x128xf32>
    %10 = tpu.matmul %4, %9, %cst {dimension_numbers = #tpu.dot_dimension_numbers<[1], [0], [0], [1], [0, 0, 1, 1], [], []>} : vector<1x8xbf16>, vector<8x128xbf16>, vector<1x128xf32> -> vector<1x128xf32>
    %c0_7 = arith.constant 0 : index
    %c0_8 = arith.constant 0 : index
    %11 = vector.load %arg3[%c0_7, %c0_8] : memref<8x256xf32, #tpu.memory_space<vmem>>, vector<1x128xf32>
    %12 = arith.addf %10, %11 : vector<1x128xf32>
    %cst_9 = arith.constant 0.000000e+00 : f32
    %13 = vector.broadcast %cst_9 : f32 to vector<1x128xf32>
    %14 = arith.subf %13, %12 : vector<1x128xf32>
    %15 = math.exp %14 : vector<1x128xf32>
    %cst_10 = arith.constant 1.000000e+00 : f32
    %16 = vector.broadcast %cst_10 : f32 to vector<1x128xf32>
    %17 = arith.addf %16, %15 : vector<1x128xf32>
    %18 = tpu.reciprocal %17 {approx = true} : vector<1x128xf32> -> vector<1x128xf32>
    %19 = arith.truncf %18 : vector<1x128xf32> to vector<1x128xbf16>
    %c16 = arith.constant 16 : index
    %c0_11 = arith.constant 0 : index
    %20 = vector.load %arg2[%c16, %c0_11] : memref<720x256xbf16, #tpu.memory_space<vmem>>, vector<128x128xbf16>
    %cst_12 = arith.constant dense<0.000000e+00> : vector<1x128xf32>
    %21 = tpu.matmul %19, %20, %cst_12 {dimension_numbers = #tpu.dot_dimension_numbers<[1], [0], [0], [1], [0, 0, 1, 1], [], []>} : vector<1x128xbf16>, vector<128x128xbf16>, vector<1x128xf32> -> vector<1x128xf32>
    %c1_13 = arith.constant 1 : index
    %c0_14 = arith.constant 0 : index
    %22 = vector.load %arg3[%c1_13, %c0_14] : memref<8x256xf32, #tpu.memory_space<vmem>>, vector<1x128xf32>
    %23 = arith.addf %21, %22 : vector<1x128xf32>
    %24 = math.tanh %23 : vector<1x128xf32>
    %c144 = arith.constant 144 : index
    %c0_15 = arith.constant 0 : index
    %25 = vector.load %arg2[%c144, %c0_15] : memref<720x256xbf16, #tpu.memory_space<vmem>>, vector<256x256xbf16>
    %c2 = arith.constant 2 : index
    %c0_16 = arith.constant 0 : index
    %26 = vector.load %arg3[%c2, %c0_16] : memref<8x256xf32, #tpu.memory_space<vmem>>, vector<1x256xf32>
    %27 = tpu.concatenate %24, %5 in 1 : vector<1x128xf32>, vector<1x128xf32> -> vector<1x256xf32>
    %28 = arith.truncf %27 : vector<1x256xf32> to vector<1x256xbf16>
    %cst_17 = arith.constant dense<0.000000e+00> : vector<1x256xf32>
    %29 = tpu.matmul %28, %25, %cst_17 {dimension_numbers = #tpu.dot_dimension_numbers<[1], [0], [0], [1], [0, 0, 1, 1], [], []>} : vector<1x256xbf16>, vector<256x256xbf16>, vector<1x256xf32> -> vector<1x256xf32>
    %30 = arith.addf %29, %26 : vector<1x256xf32>
    %31 = vector.extract_strided_slice %30 {offsets = [0, 0], sizes = [1, 32], strides = [1, 1]} : vector<1x256xf32> to vector<1x32xf32>
    %32 = vector.extract_strided_slice %30 {offsets = [0, 128], sizes = [1, 32], strides = [1, 1]} : vector<1x256xf32> to vector<1x32xf32>
    %33 = arith.addf %31, %32 : vector<1x32xf32>
    %cst_18 = arith.constant 0.000000e+00 : f32
    %34 = vector.broadcast %cst_18 : f32 to vector<1x32xf32>
    %35 = arith.subf %34, %33 : vector<1x32xf32>
    %36 = math.exp %35 : vector<1x32xf32>
    %cst_19 = arith.constant 1.000000e+00 : f32
    %37 = vector.broadcast %cst_19 : f32 to vector<1x32xf32>
    %38 = arith.addf %37, %36 : vector<1x32xf32>
    %39 = tpu.reciprocal %38 {approx = true} : vector<1x32xf32> -> vector<1x32xf32>
    %40 = vector.extract_strided_slice %30 {offsets = [0, 32], sizes = [1, 32], strides = [1, 1]} : vector<1x256xf32> to vector<1x32xf32>
    %41 = vector.extract_strided_slice %30 {offsets = [0, 160], sizes = [1, 32], strides = [1, 1]} : vector<1x256xf32> to vector<1x32xf32>
    %42 = arith.addf %40, %41 : vector<1x32xf32>
    %cst_20 = arith.constant 0.000000e+00 : f32
    %43 = vector.broadcast %cst_20 : f32 to vector<1x32xf32>
    %44 = arith.subf %43, %42 : vector<1x32xf32>
    %45 = math.exp %44 : vector<1x32xf32>
    %cst_21 = arith.constant 1.000000e+00 : f32
    %46 = vector.broadcast %cst_21 : f32 to vector<1x32xf32>
    %47 = arith.addf %46, %45 : vector<1x32xf32>
    %48 = tpu.reciprocal %47 {approx = true} : vector<1x32xf32> -> vector<1x32xf32>
    %49 = vector.extract_strided_slice %30 {offsets = [0, 64], sizes = [1, 32], strides = [1, 1]} : vector<1x256xf32> to vector<1x32xf32>
    %50 = vector.extract_strided_slice %30 {offsets = [0, 192], sizes = [1, 32], strides = [1, 1]} : vector<1x256xf32> to vector<1x32xf32>
    %51 = arith.mulf %39, %50 : vector<1x32xf32>
    %52 = arith.addf %49, %51 : vector<1x32xf32>
    %53 = math.tanh %52 : vector<1x32xf32>
    %cst_22 = arith.constant 1.000000e+00 : f32
    %54 = vector.broadcast %cst_22 : f32 to vector<1x32xf32>
    %55 = arith.subf %54, %48 : vector<1x32xf32>
    %56 = arith.mulf %55, %53 : vector<1x32xf32>
    %57 = arith.mulf %48, %7 : vector<1x32xf32>
    %58 = arith.addf %56, %57 : vector<1x32xf32>
    %c0_23 = arith.constant 0 : index
    %c0_24 = arith.constant 0 : index
    %59 = vector.load %arg7[%c0_23, %c0_24] : memref<8x128xf32, #tpu.memory_space<vmem>>, vector<1x32xf32>
    tpu.vector_store %arg7[%c0_23, %c0_24], %58 {strides = array<i32>} : memref<8x128xf32, #tpu.memory_space<vmem>>, vector<1x32xf32>,
    %c0_25 = arith.constant 0 : index
    %c0_26 = arith.constant 0 : index
    %60 = vector.load %arg7[%c0_25, %c0_26] : memref<8x128xf32, #tpu.memory_space<vmem>>, vector<1x128xf32>
    %c400 = arith.constant 400 : index
    %c0_27 = arith.constant 0 : index
    %61 = vector.load %arg2[%c400, %c0_27] : memref<720x256xbf16, #tpu.memory_space<vmem>>, vector<256x256xbf16>
    %c3 = arith.constant 3 : index
    %c0_28 = arith.constant 0 : index
    %62 = vector.load %arg3[%c3, %c0_28] : memref<8x256xf32, #tpu.memory_space<vmem>>, vector<1x256xf32>
    %63 = tpu.concatenate %60, %6 in 1 : vector<1x128xf32>, vector<1x128xf32> -> vector<1x256xf32>
    %64 = arith.truncf %63 : vector<1x256xf32> to vector<1x256xbf16>
    %cst_29 = arith.constant dense<0.000000e+00> : vector<1x256xf32>
    %65 = tpu.matmul %64, %61, %cst_29 {dimension_numbers = #tpu.dot_dimension_numbers<[1], [0], [0], [1], [0, 0, 1, 1], [], []>} : vector<1x256xbf16>, vector<256x256xbf16>, vector<1x256xf32> -> vector<1x256xf32>
    %66 = arith.addf %65, %62 : vector<1x256xf32>
    %67 = vector.extract_strided_slice %66 {offsets = [0, 0], sizes = [1, 32], strides = [1, 1]} : vector<1x256xf32> to vector<1x32xf32>
    %68 = vector.extract_strided_slice %66 {offsets = [0, 128], sizes = [1, 32], strides = [1, 1]} : vector<1x256xf32> to vector<1x32xf32>
    %69 = arith.addf %67, %68 : vector<1x32xf32>
    %cst_30 = arith.constant 0.000000e+00 : f32
    %70 = vector.broadcast %cst_30 : f32 to vector<1x32xf32>
    %71 = arith.subf %70, %69 : vector<1x32xf32>
    %72 = math.exp %71 : vector<1x32xf32>
    %cst_31 = arith.constant 1.000000e+00 : f32
    %73 = vector.broadcast %cst_31 : f32 to vector<1x32xf32>
    %74 = arith.addf %73, %72 : vector<1x32xf32>
    %75 = tpu.reciprocal %74 {approx = true} : vector<1x32xf32> -> vector<1x32xf32>
    %76 = vector.extract_strided_slice %66 {offsets = [0, 32], sizes = [1, 32], strides = [1, 1]} : vector<1x256xf32> to vector<1x32xf32>
    %77 = vector.extract_strided_slice %66 {offsets = [0, 160], sizes = [1, 32], strides = [1, 1]} : vector<1x256xf32> to vector<1x32xf32>
    %78 = arith.addf %76, %77 : vector<1x32xf32>
    %cst_32 = arith.constant 0.000000e+00 : f32
    %79 = vector.broadcast %cst_32 : f32 to vector<1x32xf32>
    %80 = arith.subf %79, %78 : vector<1x32xf32>
    %81 = math.exp %80 : vector<1x32xf32>
    %cst_33 = arith.constant 1.000000e+00 : f32
    %82 = vector.broadcast %cst_33 : f32 to vector<1x32xf32>
    %83 = arith.addf %82, %81 : vector<1x32xf32>
    %84 = tpu.reciprocal %83 {approx = true} : vector<1x32xf32> -> vector<1x32xf32>
    %85 = vector.extract_strided_slice %66 {offsets = [0, 64], sizes = [1, 32], strides = [1, 1]} : vector<1x256xf32> to vector<1x32xf32>
    %86 = vector.extract_strided_slice %66 {offsets = [0, 192], sizes = [1, 32], strides = [1, 1]} : vector<1x256xf32> to vector<1x32xf32>
    %87 = arith.mulf %75, %86 : vector<1x32xf32>
    %88 = arith.addf %85, %87 : vector<1x32xf32>
    %89 = math.tanh %88 : vector<1x32xf32>
    %cst_34 = arith.constant 1.000000e+00 : f32
    %90 = vector.broadcast %cst_34 : f32 to vector<1x32xf32>
    %91 = arith.subf %90, %84 : vector<1x32xf32>
    %92 = arith.mulf %91, %89 : vector<1x32xf32>
    %93 = arith.mulf %84, %8 : vector<1x32xf32>
    %94 = arith.addf %92, %93 : vector<1x32xf32>
    %c1_35 = arith.constant 1 : index
    %c0_36 = arith.constant 0 : index
    %95 = vector.load %arg7[%c1_35, %c0_36] : memref<8x128xf32, #tpu.memory_space<vmem>>, vector<1x32xf32>
    tpu.vector_store %arg7[%c1_35, %c0_36], %94 {strides = array<i32>} : memref<8x128xf32, #tpu.memory_space<vmem>>, vector<1x32xf32>,
    %96 = arith.truncf %94 : vector<1x32xf32> to vector<1x32xbf16>
    %c656 = arith.constant 656 : index
    %c0_37 = arith.constant 0 : index
    %97 = vector.load %arg2[%c656, %c0_37] : memref<720x256xbf16, #tpu.memory_space<vmem>>, vector<32x128xbf16>
    %cst_38 = arith.constant dense<0.000000e+00> : vector<1x128xf32>
    %98 = tpu.matmul %96, %97, %cst_38 {dimension_numbers = #tpu.dot_dimension_numbers<[1], [0], [0], [1], [0, 0, 1, 1], [], []>} : vector<1x32xbf16>, vector<32x128xbf16>, vector<1x128xf32> -> vector<1x128xf32>
    %c4 = arith.constant 4 : index
    %c0_39 = arith.constant 0 : index
    %99 = vector.load %arg3[%c4, %c0_39] : memref<8x256xf32, #tpu.memory_space<vmem>>, vector<1x128xf32>
    %100 = arith.addf %98, %99 : vector<1x128xf32>
    %cst_40 = arith.constant 0.000000e+00 : f32
    %101 = vector.broadcast %cst_40 : f32 to vector<1x128xf32>
    %102 = arith.maximumf %100, %101 : vector<1x128xf32>
    %103 = vector.extract_strided_slice %102 {offsets = [0, 0], sizes = [1, 32], strides = [1, 1]} : vector<1x128xf32> to vector<1x32xf32>
    %104 = arith.truncf %103 : vector<1x32xf32> to vector<1x32xbf16>
    %c688 = arith.constant 688 : index
    %c0_41 = arith.constant 0 : index
    %105 = vector.load %arg2[%c688, %c0_41] : memref<720x256xbf16, #tpu.memory_space<vmem>>, vector<32x128xbf16>
    %cst_42 = arith.constant dense<0.000000e+00> : vector<1x128xf32>
    %106 = tpu.matmul %104, %105, %cst_42 {dimension_numbers = #tpu.dot_dimension_numbers<[1], [0], [0], [1], [0, 0, 1, 1], [], []>} : vector<1x32xbf16>, vector<32x128xbf16>, vector<1x128xf32> -> vector<1x128xf32>
    %c5 = arith.constant 5 : index
    %c0_43 = arith.constant 0 : index
    %107 = vector.load %arg3[%c5, %c0_43] : memref<8x256xf32, #tpu.memory_space<vmem>>, vector<1x128xf32>
    %108 = arith.addf %106, %107 : vector<1x128xf32>
    %109 = tpu.iota {dimensions = array<i32: 1>} : vector<1x128xi32>
    %c5_i32 = arith.constant 5 : i32
    %110 = vector.broadcast %c5_i32 : i32 to vector<1x128xi32>
    %111 = arith.cmpi slt, %109, %110 : vector<1x128xi32>
    %cst_44 = arith.constant -1.000000e+30 : f32
    %112 = vector.broadcast %cst_44 : f32 to vector<1x128xf32>
    %113 = arith.select %111, %108, %112 : vector<1x128xi1>, vector<1x128xf32>
    %cst_45 = arith.constant dense<0xFF800000> : vector<1xf32>
    %114 = vector.multi_reduction <maximumf>, %113, %cst_45 [1] : vector<1x128xf32> to vector<1xf32>
    %115 = vector.shape_cast %114 : vector<1xf32> to vector<1x1xf32>
    %116 = vector.broadcast %115 : vector<1x1xf32> to vector<1x128xf32>
    %117 = arith.subf %113, %116 : vector<1x128xf32>
    %118 = math.exp %117 : vector<1x128xf32>
    %cst_46 = arith.constant 0.000000e+00 : f32
    %119 = vector.broadcast %cst_46 : f32 to vector<1x128xf32>
    %120 = arith.select %111, %118, %119 : vector<1x128xi1>, vector<1x128xf32>
    %cst_47 = arith.constant dense<0.000000e+00> : vector<1xf32>
    %121 = vector.multi_reduction <add>, %120, %cst_47 [1] : vector<1x128xf32> to vector<1xf32>
    %122 = vector.shape_cast %121 : vector<1xf32> to vector<1x1xf32>
    %123 = tpu.reciprocal %122 {approx = true} : vector<1x1xf32> -> vector<1x1xf32>
    %124 = vector.broadcast %123 : vector<1x1xf32> to vector<1x128xf32>
    %125 = arith.mulf %120, %124 : vector<1x128xf32>
    %c5_i32_48 = arith.constant 5 : i32
    %126 = vector.broadcast %c5_i32_48 : i32 to vector<1x128xi32>
    %127 = arith.cmpi eq, %109, %126 : vector<1x128xi32>
    %cst_49 = arith.constant 0.000000e+00 : f32
    %128 = vector.broadcast %cst_49 : f32 to vector<1x128xf32>
    %129 = arith.select %127, %108, %128 : vector<1x128xi1>, vector<1x128xf32>
    %130 = arith.addf %125, %129 : vector<1x128xf32>
    %131 = vector.shape_cast %130 : vector<1x128xf32> to vector<1x128xf32>
    %132 = vector.broadcast %131 : vector<1x128xf32> to vector<8x128xf32>
    %c0_50 = arith.constant 0 : index
    %c0_51 = arith.constant 0 : index
    %133 = vector.load %arg5[%c0_50, %c0_51] : memref<8x128xf32, #tpu.memory_space<vmem>>, vector<8x128xf32>
    tpu.vector_store %arg5[%c0_50, %c0_51], %132 {strides = array<i32>} : memref<8x128xf32, #tpu.memory_space<vmem>>, vector<8x128xf32>,
    %c7_i32 = arith.constant 7 : i32
    %134 = arith.cmpi eq, %arg0, %c7_i32 : i32
    %135 = arith.extui %134 : i1 to i32
    %c0_i32_52 = arith.constant 0 : i32
    %136 = arith.cmpi ne, %135, %c0_i32_52 : i32
    scf.if %136 {
      %c0_53 = arith.constant 0 : index
      %c0_54 = arith.constant 0 : index
      %137 = vector.load %arg7[%c0_53, %c0_54] : memref<8x128xf32, #tpu.memory_space<vmem>>, vector<8x128xf32>
      %c0_55 = arith.constant 0 : index
      %c0_56 = arith.constant 0 : index
      %138 = vector.load %arg6[%c0_55, %c0_56] : memref<8x128xf32, #tpu.memory_space<vmem>>, vector<8x128xf32>
      tpu.vector_store %arg6[%c0_55, %c0_56], %137 {strides = array<i32>} : memref<8x128xf32, #tpu.memory_space<vmem>>, vector<8x128xf32>,
    } else {
    }
    return
  }
  func.func @transform_0(%arg0: i32) -> (i32, i32) {
    %c0_i32 = arith.constant 0 : i32
    %c0_i32_0 = arith.constant 0 : i32
    return %arg0, %c0_i32 : i32, i32
  }
  func.func @transform_1(%arg0: i32) -> (i32, i32) {
    %c0_i32 = arith.constant 0 : i32
    %c0_i32_0 = arith.constant 0 : i32
    %c0_i32_1 = arith.constant 0 : i32
    return %c0_i32, %c0_i32_0 : i32, i32
  }
  func.func @transform_2(%arg0: i32) -> (i32, i32) {
    %c0_i32 = arith.constant 0 : i32
    %c0_i32_0 = arith.constant 0 : i32
    %c0_i32_1 = arith.constant 0 : i32
    return %c0_i32, %c0_i32_0 : i32, i32
  }
  func.func @transform_3(%arg0: i32) -> (i32, i32) {
    %c0_i32 = arith.constant 0 : i32
    %c0_i32_0 = arith.constant 0 : i32
    %c0_i32_1 = arith.constant 0 : i32
    return %c0_i32, %c0_i32_0 : i32, i32
  }
  func.func @transform_4(%arg0: i32) -> (i32, i32) {
    %c0_i32 = arith.constant 0 : i32
    %c0_i32_0 = arith.constant 0 : i32
    return %arg0, %c0_i32 : i32, i32
  }
  func.func @transform_5(%arg0: i32) -> (i32, i32) {
    %c0_i32 = arith.constant 0 : i32
    %c0_i32_0 = arith.constant 0 : i32
    %c0_i32_1 = arith.constant 0 : i32
    return %c0_i32, %c0_i32_0 : i32, i32
  }
}

</mosaic_0001>

<llo_original>
// kernel: policy_rollout.1
$region0: #{policy_rollout.1}
  #allocation0 [shape = 'u32[]', space=smem, size = 0x4, offset = 0x4, fixed_abs, tag = 'smem constant byte address 0x4 - core index']
  #allocation1 [shape = 'u32[144,128]{1,0:T(1,128)}', space=vmem, size = 0x12000, scoped, tag = 'internal scratch']
  #allocation2 [shape = 'f32[8,128]{1,0:T(8,128)}', space=vmem, size = 0x1000, scoped, tag = 'scratch operand']
  %s0 = inlined_call_operand.vmem [shape: f32[64,128], index: 0, kind: input, shape index: {}]
  %s1 = inlined_call_operand.hbm [shape: bf16[720,256], index: 1, kind: input, shape index: {}]
  %s2 = inlined_call_operand.vmem [shape: f32[8,256], index: 2, kind: input, shape index: {}]
  %s3 = inlined_call_operand.vmem [shape: f32[8,128], index: 3, kind: input, shape index: {}]
  %s4 = inlined_call_operand.vmem [shape: f32[64,128], index: 4, kind: output, shape index: {0}]
  %s5 = inlined_call_operand.vmem [shape: f32[8,128], index: 5, kind: output, shape index: {1}]
  %6 = xla_tuple %s4, %s5
  %s7 = sld [smem:[#allocation0]]
  $region69: #{policy_rollout.1} parent=0
    _
  %s9 = ssub.s32 1, %s7
  %s10 = scalar_select 0, %s9, %s7
  $region1: #{policy_rollout.1} parent=0
    #allocation3 [shape = 'u8[368640]{0}', space=vmem, size = 0x5a000, scoped, tag = 'input window, operand 1, single buffered']
    #allocation4 [shape = 's32[2]{0}', space=sflag, size = 0x8, scoped, tag = 'scoped memory for policy_rollout.1']
    %11 = vsyncpa [#allocation4], 0
    loop: start=0, step=1, limit=10
    $region2: #{policy_rollout.1} parent=1 // loop_pre_header
      _
    $region3: #{policy_rollout.1} parent=1 // loop_header
      %s13 = sphi 0, %s17
      %p14 = scmp.ge.s32.totalorder %s13, 10
      %s23 = sphi 0, %s25
      %s26 = sphi 0, %s23
      %s27 = sphi 0, %s26
      %s43 = sphi 0, %s27
      %s47 = sphi 0, %s47
      %s49 = sphi 0, %s47
      %s50 = sphi 0, %s49
      %s64 = sphi 0, %s50
      %s68 = sphi 0, %s68
      %s70 = sphi 0, %s68
      %s71 = sphi 0, %s70
      %s85 = sphi 0, %s71
      %s89 = sphi 0, %s89
      %s91 = sphi 0, %s89
      %s92 = sphi 0, %s91
      %s106 = sphi 0, %s92
      %s112 = sphi 0, %s114
      %s115 = sphi 0, %s112
      %s116 = sphi 0, %s115
      %s132 = sphi 0, %s116
      %s136 = sphi 0, %s136
      %s138 = sphi 0, %s136
      %s139 = sphi 0, %s138
      %s153 = sphi 0, %s139
    $region4: #{policy_rollout.1} parent=1 // loop_header_branch
      %16 = sbr.rel (%p14) target = $region8
    $region5: #{policy_rollout.1} parent=1 // loop_body
      %s18 = ssub.s32 %s13, 1
      %s19 = ssub.s32 %s13, 2
      %s20 = sadd.s32 %s13, 1
      %s21 = ssub.s32 %s13, %s20
      %p22 = scmp.eq.s32.totalorder %s21, 0
      %s24 = sadd.s32 %s23, 1
      %s25 = scalar_select %p22, %s23, %s24
      %p28 = pneg %p22
      %p29 = scmp.eq.s32.totalorder %s13, 7
      %p30 = por %p28, %p29
      %p31 = scmp.ne.s32.totalorder %s23, %s26
      %p32 = scmp.eq.s32.totalorder %s13, 0
      %p33 = por %p31, %p32
      %p34 = scmp.ne.s32.totalorder %s23, %s26
      %p35 = scmp.eq.s32.totalorder %s18, 7
      %p36 = por %p34, %p35
      %p37 = scmp.ne.s32.totalorder %s26, %s27
      %p38 = scmp.eq.s32.totalorder %s18, 0
      %p39 = por %p37, %p38
      %p40 = scmp.ne.s32.totalorder %s26, %s27
      %p41 = scmp.eq.s32.totalorder %s19, 7
      %p42 = por %p40, %p41
      %p44 = scmp.ne.s32.totalorder %s27, %s43
      %p45 = scmp.eq.s32.totalorder %s19, 0
      %p46 = por %p44, %p45
      %s48 = sadd.s32 %s47, 1
      %p51 = scmp.eq.s32.totalorder %s13, 7
      %p52 = scmp.ne.s32.totalorder %s47, %s49
      %p53 = scmp.eq.s32.totalorder %s13, 0
      %p54 = por %p52, %p53
      %p55 = scmp.ne.s32.totalorder %s47, %s49
      %p56 = scmp.eq.s32.totalorder %s18, 7
      %p57 = por %p55, %p56
      %p58 = scmp.ne.s32.totalorder %s49, %s50
      %p59 = scmp.eq.s32.totalorder %s18, 0
      %p60 = por %p58, %p59
      %p61 = scmp.ne.s32.totalorder %s49, %s50
      %p62 = scmp.eq.s32.totalorder %s19, 7
      %p63 = por %p61, %p62
      %p65 = scmp.ne.s32.totalorder %s50, %s64
      %p66 = scmp.eq.s32.totalorder %s19, 0
      %p67 = por %p65, %p66
      %s69 = sadd.s32 %s68, 1
      %p72 = scmp.eq.s32.totalorder %s13, 7
      %p73 = scmp.ne.s32.totalorder %s68, %s70
      %p74 = scmp.eq.s32.totalorder %s13, 0
      %p75 = por %p73, %p74
      %p76 = scmp.ne.s32.totalorder %s68, %s70
      %p77 = scmp.eq.s32.totalorder %s18, 7
      %p78 = por %p76, %p77
      %p79 = scmp.ne.s32.totalorder %s70, %s71
      %p80 = scmp.eq.s32.totalorder %s18, 0
      %p81 = por %p79, %p80
      %p82 = scmp.ne.s32.totalorder %s70, %s71
      %p83 = scmp.eq.s32.totalorder %s19, 7
      %p84 = por %p82, %p83
      %p86 = scmp.ne.s32.totalorder %s71, %s85
      %p87 = scmp.eq.s32.totalorder %s19, 0
      %p88 = por %p86, %p87
      %s90 = sadd.s32 %s89, 1
      %p93 = scmp.eq.s32.totalorder %s13, 7
      %p94 = scmp.ne.s32.totalorder %s89, %s91
      %p95 = scmp.eq.s32.totalorder %s13, 0
      %p96 = por %p94, %p95
      %p97 = scmp.ne.s32.totalorder %s89, %s91
      %p98 = scmp.eq.s32.totalorder %s18, 7
      %p99 = por %p97, %p98
      %p100 = scmp.ne.s32.totalorder %s91, %s92
      %p101 = scmp.eq.s32.totalorder %s18, 0
      %p102 = por %p100, %p101
      %p103 = scmp.ne.s32.totalorder %s91, %s92
      %p104 = scmp.eq.s32.totalorder %s19, 7
      %p105 = por %p103, %p104
      %p107 = scmp.ne.s32.totalorder %s92, %s106
      %p108 = scmp.eq.s32.totalorder %s19, 0
      %p109 = por %p107, %p108
      %s110 = ssub.s32 %s13, %s20
      %p111 = scmp.eq.s32.totalorder %s110, 0
      %s113 = sadd.s32 %s112, 1
      %s114 = scalar_select %p111, %s112, %s113
      %p117 = pneg %p111
      %p118 = scmp.eq.s32.totalorder %s13, 7
      %p119 = por %p117, %p118
      %p120 = scmp.ne.s32.totalorder %s112, %s115
      %p121 = scmp.eq.s32.totalorder %s13, 0
      %p122 = por %p120, %p121
      %p123 = scmp.ne.s32.totalorder %s112, %s115
      %p124 = scmp.eq.s32.totalorder %s18, 7
      %p125 = por %p123, %p124
      %p126 = scmp.ne.s32.totalorder %s115, %s116
      %p127 = scmp.eq.s32.totalorder %s18, 0
      %p128 = por %p126, %p127
      %p129 = scmp.ne.s32.totalorder %s115, %s116
      %p130 = scmp.eq.s32.totalorder %s19, 7
      %p131 = por %p129, %p130
      %p133 = scmp.ne.s32.totalorder %s116, %s132
      %p134 = scmp.eq.s32.totalorder %s19, 0
      %p135 = por %p133, %p134
      %s137 = sadd.s32 %s136, 1
      %p140 = scmp.eq.s32.totalorder %s13, 7
      %p141 = scmp.ne.s32.totalorder %s136, %s138
      %p142 = scmp.eq.s32.totalorder %s13, 0
      %p143 = por %p141, %p142
      %p144 = scmp.ne.s32.totalorder %s136, %s138
      %p145 = scmp.eq.s32.totalorder %s18, 7
      %p146 = por %p144, %p145
      %p147 = scmp.ne.s32.totalorder %s138, %s139
      %p148 = scmp.eq.s32.totalorder %s18, 0
      %p149 = por %p147, %p148
      %p150 = scmp.ne.s32.totalorder %s138, %s139
      %p151 = scmp.eq.s32.totalorder %s19, 7
      %p152 = por %p150, %p151
      %p154 = scmp.ne.s32.totalorder %s139, %s153
      %p155 = scmp.eq.s32.totalorder %s19, 0
      %p156 = por %p154, %p155
      %p157 = scmp.le.s32.totalorder 1, %s13
      %p158 = scmp.lt.s32.totalorder %s13, 9
      %p159 = pnand %p157, %p158
      %p160 = pneg %p159
      // Predicated region
      $region9: #{policy_rollout.1} parent=5 // pred_check
        _
      $region10: #{policy_rollout.1} parent=5 // pred_check_branch
        %162 = sbr.rel (%p159) target = $region12
      $region11: #{policy_rollout.1} parent=5 // pred_region
        %s163 = ssub.s32 %s13, 1
        // Predicated region
        $region13: #{policy_rollout.1} parent=11 // pred_check
          %p164 = pneg %p60
        $region14: #{policy_rollout.1} parent=11 // pred_check_branch
          %166 = sbr.rel (%p164) target = $region16
        $region15: #{policy_rollout.1} parent=11 // pred_region
          %s168 = ssub.s32 11520, 11520
          %169 = vsyncadd [#allocation4], %s168
          %s170 = sshll.u32 [#allocation3], 4
          %s171 = int_to_ptr.vmem [resolvable:$true] %s170
          %176 = dma.hbm_to_vmem [thread:$0]  %s1, 11520, %s171, [#allocation4], 128, 128, 8
        $region16: #{policy_rollout.1} parent=11 // pred_fallthru
          _
        // Predicated region
        $region17: #{policy_rollout.1} parent=11 // pred_check
          %p177 = pneg %p81
        $region18: #{policy_rollout.1} parent=11 // pred_check_branch
          %179 = sbr.rel (%p177) target = $region20
        $region19: #{policy_rollout.1} parent=11 // pred_region
          _
        $region20: #{policy_rollout.1} parent=11 // pred_fallthru
          _
        // Predicated region
        $region21: #{policy_rollout.1} parent=11 // pred_check
          %p180 = pneg %p102
        $region22: #{policy_rollout.1} parent=11 // pred_check_branch
          %182 = sbr.rel (%p180) target = $region24
        $region23: #{policy_rollout.1} parent=11 // pred_region
          _
        $region24: #{policy_rollout.1} parent=11 // pred_fallthru
          _
      $region12: #{policy_rollout.1} parent=5 // pred_fallthru
        _
      %p183 = scmp.lt.s32.totalorder %s13, 8
      // Predicated region
      $region25: #{policy_rollout.1} parent=5 // pred_check
        %p184 = pneg %p183
      $region26: #{policy_rollout.1} parent=5 // pred_check_branch
        %186 = sbr.rel (%p184) target = $region28
      $region27: #{policy_rollout.1} parent=5 // pred_region
        // Predicated region
        $region29: #{policy_rollout.1} parent=27 // pred_check
          %p187 = pneg %p33
        $region30: #{policy_rollout.1} parent=27 // pred_check_branch
          %189 = sbr.rel (%p187) target = $region32
        $region31: #{policy_rollout.1} parent=27 // pred_region
          %p190 = scmp.lt.s32.totalorder %s13, 7
          %s191 = scalar_select %p190, %s13, 7
          %s192 = smul.addr %s191, 8
          %s193 = scalar_lea.vmem %s0, %s192
        $region32: #{policy_rollout.1} parent=27 // pred_fallthru
          _
      $region28: #{policy_rollout.1} parent=5 // pred_fallthru
        _
      %p194 = scmp.le.s32.totalorder 1, %s13
      %p195 = scmp.lt.s32.totalorder %s13, 9
      %p196 = pnand %p194, %p195
      %p197 = pneg %p196
      // Predicated region
      $region33: #{policy_rollout.1} parent=5 // pred_check
        _
      $region34: #{policy_rollout.1} parent=5 // pred_check_branch
        %199 = sbr.rel (%p196) target = $region36
      $region35: #{policy_rollout.1} parent=5 // pred_region
        %s200 = ssub.s32 %s13, 1
        // Predicated region
        $region37: #{policy_rollout.1} parent=35 // pred_check
          %p201 = pneg %p60
        $region38: #{policy_rollout.1} parent=35 // pred_check_branch
          %203 = sbr.rel (%p201) target = $region40
        $region39: #{policy_rollout.1} parent=35 // pred_region
          %204 = dma.done [#allocation4], 11520
        $region40: #{policy_rollout.1} parent=35 // pred_fallthru
          _
        %p205 = scmp.lt.s32.totalorder %s18, 7
        %s206 = scalar_select %p205, %s18, 7
        %s207 = smul.addr %s206, 8
        %s208 = scalar_lea.vmem %s0, %s207
        %p209 = pneg %p39
        %p210 = pneg %p36
        %p211 = pneg %p60
        %p212 = pneg %p57
        %p213 = pneg %p81
        %p214 = pneg %p78
        %p215 = pneg %p102
        %p216 = pneg %p99
        %p217 = pneg %p128
        %p218 = pneg %p125
        %p219 = scmp.lt.s32.totalorder %s18, 7
        %s220 = scalar_select %p219, %s18, 7
        %s221 = smul.addr %s220, 8
        %s222 = scalar_lea.vmem %s4, %s221
        %p223 = pneg %p149
        %p224 = pneg %p146
        %p225 = scmp.lt.s32.totalorder %s18, 7
        %s226 = scalar_select %p225, %s18, 7
        %s227 = smul.addr %s226, 8
        %s228 = scalar_lea.vmem %s0, %s227
        %p229 = scmp.lt.s32.totalorder %s18, 7
        %s230 = scalar_select %p229, %s18, 7
        %s231 = smul.addr %s230, 8
        %s232 = scalar_lea.vmem %s4, %s231
        %p234 = scmp.eq.s32.totalorder %s18, 0
        // Predicated region
        $region41: #{policy_rollout.1} parent=35 // pred_check
          %p235 = pneg %p234
        $region42: #{policy_rollout.1} parent=35 // pred_check_branch
          %237 = sbr.rel (%p235) target = $region44
        $region43: #{policy_rollout.1} parent=35 // pred_region
          %v238 = vld [vmem:[%s3] sm:$0xff]
          %239 = vst [vmem:[#allocation2] sm:$0xff] %v238
        $region44: #{policy_rollout.1} parent=35 // pred_fallthru
          _
        %v240 = vld [vmem:[%s228] sm:$0x1]
        %v241 = vpack.c.bf16 %v240, %v240
        %v242 = vld [vmem:[#allocation2] sm:$0x1]
        %v243 = vld [vmem:[#allocation2 + $0x1] sm:$0x1]
        %v244 = vld [vmem:[#allocation3] sm:$0xf]
        %v245 = vld [vmem:[%s2] ss:$0 sm:$0xff]
        %vm246 = vcmask 64512
        %v248 = vsel %vm246, %v241, 0
        %vm250 = vcmask 1043456
        %v252 = vsel %vm250, %v244, 0
        %254 = vmatprep.subr.bf16.mxu0 0
        %255 = vmatpush1.bf16.msra.mxu0 %v252
        %256 = vmatprep.subr.bf16.mxu0 0
        %257 = vmatpush1.bf16.msra.mxu0 0
        %258 = vmatprep.subr.bf16.mxu0 0
        %259 = vmatpush1.bf16.msra.mxu0 0
        %260 = vmatprep.subr.bf16.mxu0 0
        %261 = vmatpush1.bf16.msra.mxu0 0
        %262 = vmatprep.subr.bf16.mxu0 0
        %263 = vmatpush1.bf16.msra.mxu0 0
        %264 = vmatprep.subr.bf16.mxu0 0
        %265 = vmatpush1.bf16.msra.mxu0 0
        %266 = vmatprep.subr.bf16.mxu0 0
        %267 = vmatpush1.bf16.msra.mxu0 0
        %268 = vmatprep.subr.bf16.mxu0 0
        %269 = vmatpush1.bf16.msra.mxu0 0
        %270 = vmatprep.subr.bf16.mxu0 0
        %271 = vmatpush1.bf16.msra.mxu0 0
        %272 = vmatprep.subr.bf16.mxu0 0
        %273 = vmatpush1.bf16.msra.mxu0 0
        %274 = vmatprep.subr.bf16.mxu0 0
        %275 = vmatpush1.bf16.msra.mxu0 0
        %276 = vmatprep.subr.bf16.mxu0 0
        %277 = vmatpush1.bf16.msra.mxu0 0
        %278 = vmatprep.subr.bf16.mxu0 0
        %279 = vmatpush1.bf16.msra.mxu0 0
        %280 = vmatprep.subr.bf16.mxu0 0
        %281 = vmatpush1.bf16.msra.mxu0 0
        %282 = vmatprep.subr.bf16.mxu0 0
        %283 = vmatpush1.bf16.msra.mxu0 0
        %284 = vmatprep.subr.bf16.mxu0 0
        %285 = vmatpush1.bf16.msra.mxu0 0
        %286 = vmatprep.mubr.bf16.mxu0 0
        %287 = vmatmul.mubr.bf16.gmra.mrb[0].mxu0 %v248
        %v288 = vpop.f32.mrb[0].mxu0
        %v289 = vadd.f32 %v245, %v288
        %v290 = vpop.f32.mrb[0].mxu0
        %v291 = vpop.f32.mrb[0].mxu0
        %v292 = vpop.f32.mrb[0].mxu0
        %293 = vdwg.mxu0
        %v294 = vsub.f32 0.0, %v289
        %v295 = vmul.f32 %v294, 1.442695
        %v296 = vpow.pop %v295
        %v297 = vadd.f32 %v296, 1.0
        %v298 = vrcp.pop %v297
        %v299 = vpack.c.bf16 %v298, %v298
        %v300 = vld [vmem:[#allocation3 + $0x10] sm:$0xf]
        %v301 = vld [vmem:[#allocation3 + $0x18] sm:$0xf]
        %v302 = vld [vmem:[#allocation3 + $0x20] sm:$0xf]
        %v303 = vld [vmem:[#allocation3 + $0x28] sm:$0xf]
        %v304 = vld [vmem:[#allocation3 + $0x30] sm:$0xf]
        %v305 = vld [vmem:[#allocation3 + $0x38] sm:$0xf]
        %v306 = vld [vmem:[#allocation3 + $0x40] sm:$0xf]
        %v307 = vld [vmem:[#allocation3 + $0x48] sm:$0xf]
        %v308 = vld [vmem:[#allocation3 + $0x50] sm:$0xf]
        %v309 = vld [vmem:[#allocation3 + $0x58] sm:$0xf]
        %v310 = vld [vmem:[#allocation3 + $0x60] sm:$0xf]
        %v311 = vld [vmem:[#allocation3 + $0x68] sm:$0xf]
        %v312 = vld [vmem:[#allocation3 + $0x70] sm:$0xf]
        %v313 = vld [vmem:[#allocation3 + $0x78] sm:$0xf]
        %v314 = vld [vmem:[#allocation3 + $0x80] sm:$0xf]
        %v315 = vld [vmem:[#allocation3 + $0x88] sm:$0xf]
        %v316 = vld [vmem:[%s2 + $0x1] ss:$0 sm:$0xff]
        %v333 = vunpack.c.l.b16 %v300
        %v334 = vunpack.c.l.b16 %v301
        %v335 = vunpack.c.l.b16 %v302
        %v336 = vunpack.c.l.b16 %v303
        %v337 = vunpack.c.l.b16 %v304
        %v338 = vunpack.c.l.b16 %v305
        %v339 = vunpack.c.l.b16 %v306
        %v340 = vunpack.c.l.b16 %v307
        %v341 = vunpack.c.l.b16 %v308
        %v342 = vunpack.c.l.b16 %v309
        %v343 = vunpack.c.l.b16 %v310
        %v344 = vunpack.c.l.b16 %v311
        %v345 = vunpack.c.l.b16 %v312
        %v346 = vunpack.c.l.b16 %v313
        %v347 = vunpack.c.l.b16 %v314
        %v348 = vunpack.c.l.b16 %v315
        %v349 = vpack.c.b16 %v334, %v333
        %v350 = vpack.c.b16 %v336, %v335
        %v351 = vpack.c.b16 %v338, %v337
        %v352 = vpack.c.b16 %v340, %v339
        %v353 = vpack.c.b16 %v342, %v341
        %v354 = vpack.c.b16 %v344, %v343
        %v355 = vpack.c.b16 %v346, %v345
        %v356 = vpack.c.b16 %v348, %v347
        %365 = vmatprep.subr.bf16.mxu0 0
        %366 = vmatpush1.bf16.msra.mxu0 %v349
        %367 = vmatprep.subr.bf16.mxu0 0
        %368 = vmatpush1.bf16.msra.mxu0 %v350
        %369 = vmatprep.subr.bf16.mxu0 0
        %370 = vmatpush1.bf16.msra.mxu0 %v351
        %371 = vmatprep.subr.bf16.mxu0 0
        %372 = vmatpush1.bf16.msra.mxu0 %v352
        %373 = vmatprep.subr.bf16.mxu0 0
        %374 = vmatpush1.bf16.msra.mxu0 %v353
        %375 = vmatprep.subr.bf16.mxu0 0
        %376 = vmatpush1.bf16.msra.mxu0 %v354
        %377 = vmatprep.subr.bf16.mxu0 0
        %378 = vmatpush1.bf16.msra.mxu0 %v355
        %379 = vmatprep.subr.bf16.mxu0 0
        %380 = vmatpush1.bf16.msra.mxu0 %v356
        %381 = vmatprep.subr.bf16.mxu0 0
        %382 = vmatpush1.bf16.msra.mxu0 0
        %383 = vmatprep.subr.bf16.mxu0 0
        %384 = vmatpush1.bf16.msra.mxu0 0
        %385 = vmatprep.subr.bf16.mxu0 0
        %386 = vmatpush1.bf16.msra.mxu0 0
        %387 = vmatprep.subr.bf16.mxu0 0
        %388 = vmatpush1.bf16.msra.mxu0 0
        %389 = vmatprep.subr.bf16.mxu0 0
        %390 = vmatpush1.bf16.msra.mxu0 0
        %391 = vmatprep.subr.bf16.mxu0 0
        %392 = vmatpush1.bf16.msra.mxu0 0
        %393 = vmatprep.subr.bf16.mxu0 0
        %394 = vmatpush1.bf16.msra.mxu0 0
        %395 = vmatprep.subr.bf16.mxu0 0
        %396 = vmatpush1.bf16.msra.mxu0 0
        %397 = vmatprep.mubr.bf16.mxu0 0
        %398 = vmatmul.mubr.bf16.gmra.mrb[0].mxu0 %v299
        %v399 = vpop.f32.mrb[0].mxu0
        %v400 = vadd.f32 %v316, %v399
        %v401 = vpop.f32.mrb[0].mxu0
        %v402 = vpop.f32.mrb[0].mxu0
        %v403 = vpop.f32.mrb[0].mxu0
        %404 = vdwg.mxu0
        %v405 = vtanh.pop %v400
        %v406 = vld [vmem:[#allocation3 + $0x90] sm:$0xff]
        %v407 = vld [vmem:[#allocation3 + $0x98] sm:$0xff]
        %v408 = vld [vmem:[#allocation3 + $0xa0] sm:$0xff]
        %v409 = vld [vmem:[#allocation3 + $0xa8] sm:$0xff]
        %v410 = vld [vmem:[#allocation3 + $0xb0] sm:$0xff]
        %v411 = vld [vmem:[#allocation3 + $0xb8] sm:$0xff]
        %v412 = vld [vmem:[#allocation3 + $0xc0] sm:$0xff]
        %v413 = vld [vmem:[#allocation3 + $0xc8] sm:$0xff]
        %v414 = vld [vmem:[#allocation3 + $0xd0] sm:$0xff]
        %v415 = vld [vmem:[#allocation3 + $0xd8] sm:$0xff]
        %v416 = vld [vmem:[#allocation3 + $0xe0] sm:$0xff]
        %v417 = vld [vmem:[#allocation3 + $0xe8] sm:$0xff]
        %v418 = vld [vmem:[#allocation3 + $0xf0] sm:$0xff]
        %v419 = vld [vmem:[#allocation3 + $0xf8] sm:$0xff]
        %v420 = vld [vmem:[#allocation3 + $0x100] sm:$0xff]
        %v421 = vld [vmem:[#allocation3 + $0x108] sm:$0xff]
        %v422 = vld [vmem:[#allocation3 + $0x110] sm:$0xff]
        %v423 = vld [vmem:[#allocation3 + $0x118] sm:$0xff]
        %v424 = vld [vmem:[#allocation3 + $0x120] sm:$0xff]
        %v425 = vld [vmem:[#allocation3 + $0x128] sm:$0xff]
        %v426 = vld [vmem:[#allocation3 + $0x130] sm:$0xff]
        %v427 = vld [vmem:[#allocation3 + $0x138] sm:$0xff]
        %v428 = vld [vmem:[#allocation3 + $0x140] sm:$0xff]
        %v429 = vld [vmem:[#allocation3 + $0x148] sm:$0xff]
        %v430 = vld [vmem:[#allocation3 + $0x150] sm:$0xff]
        %v431 = vld [vmem:[#allocation3 + $0x158] sm:$0xff]
        %v432 = vld [vmem:[#allocation3 + $0x160] sm:$0xff]
        %v433 = vld [vmem:[#allocation3 + $0x168] sm:$0xff]
        %v434 = vld [vmem:[#allocation3 + $0x170] sm:$0xff]
        %v435 = vld [vmem:[#allocation3 + $0x178] sm:$0xff]
        %v436 = vld [vmem:[#allocation3 + $0x180] sm:$0xff]
        %v437 = vld [vmem:[#allocation3 + $0x188] sm:$0xff]
        %s438 = scalar_lea.vmem %s2, 2
        %v439 = vld [vmem:[%s438] ss:$8 sm:$0x3]
        %v440 = vpack.c.bf16 %v405, %v405
        %v441 = vpack.c.bf16 %v242, %v242
        %v474 = vunpack.c.l.b16 %v406
        %v475 = vunpack.c.h.b16 %v406
        %v476 = vunpack.c.l.b16 %v407
        %v477 = vunpack.c.h.b16 %v407
        %v478 = vunpack.c.l.b16 %v408
        %v479 = vunpack.c.h.b16 %v408
        %v480 = vunpack.c.l.b16 %v409
        %v481 = vunpack.c.h.b16 %v409
        %v482 = vunpack.c.l.b16 %v410
        %v483 = vunpack.c.h.b16 %v410
        %v484 = vunpack.c.l.b16 %v411
        %v485 = vunpack.c.h.b16 %v411
        %v486 = vunpack.c.l.b16 %v412
        %v487 = vunpack.c.h.b16 %v412
        %v488 = vunpack.c.l.b16 %v413
        %v489 = vunpack.c.h.b16 %v413
        %v490 = vunpack.c.l.b16 %v414
        %v491 = vunpack.c.h.b16 %v414
        %v492 = vunpack.c.l.b16 %v415
        %v493 = vunpack.c.h.b16 %v415
        %v494 = vunpack.c.l.b16 %v416
        %v495 = vunpack.c.h.b16 %v416
        %v496 = vunpack.c.l.b16 %v417
        %v497 = vunpack.c.h.b16 %v417
        %v498 = vunpack.c.l.b16 %v418
        %v499 = vunpack.c.h.b16 %v418
        %v500 = vunpack.c.l.b16 %v419
        %v501 = vunpack.c.h.b16 %v419
        %v502 = vunpack.c.l.b16 %v420
        %v503 = vunpack.c.h.b16 %v420
        %v504 = vunpack.c.l.b16 %v421
        %v505 = vunpack.c.h.b16 %v421
        %v506 = vunpack.c.l.b16 %v422
        %v507 = vunpack.c.h.b16 %v422
        %v508 = vunpack.c.l.b16 %v423
        %v509 = vunpack.c.h.b16 %v423
        %v510 = vunpack.c.l.b16 %v424
        %v511 = vunpack.c.h.b16 %v424
        %v512 = vunpack.c.l.b16 %v425
        %v513 = vunpack.c.h.b16 %v425
        %v514 = vunpack.c.l.b16 %v426
        %v515 = vunpack.c.h.b16 %v426
        %v516 = vunpack.c.l.b16 %v427
        %v517 = vunpack.c.h.b16 %v427
        %v518 = vunpack.c.l.b16 %v428
        %v519 = vunpack.c.h.b16 %v428
        %v520 = vunpack.c.l.b16 %v429
        %v521 = vunpack.c.h.b16 %v429
        %v522 = vunpack.c.l.b16 %v430
        %v523 = vunpack.c.h.b16 %v430
        %v524 = vunpack.c.l.b16 %v431
        %v525 = vunpack.c.h.b16 %v431
        %v526 = vunpack.c.l.b16 %v432
        %v527 = vunpack.c.h.b16 %v432
        %v528 = vunpack.c.l.b16 %v433
        %v529 = vunpack.c.h.b16 %v433
        %v530 = vunpack.c.l.b16 %v434
        %v531 = vunpack.c.h.b16 %v434
        %v532 = vunpack.c.l.b16 %v435
        %v533 = vunpack.c.h.b16 %v435
        %v534 = vunpack.c.l.b16 %v436
        %v535 = vunpack.c.h.b16 %v436
        %v536 = vunpack.c.l.b16 %v437
        %v537 = vunpack.c.h.b16 %v437
        %v538 = vpack.c.b16 %v476, %v474
        %v539 = vpack.c.b16 %v477, %v475
        %v540 = vpack.c.b16 %v480, %v478
        %v541 = vpack.c.b16 %v481, %v479
        %v542 = vpack.c.b16 %v484, %v482
        %v543 = vpack.c.b16 %v485, %v483
        %v544 = vpack.c.b16 %v488, %v486
        %v545 = vpack.c.b16 %v489, %v487
        %v546 = vpack.c.b16 %v492, %v490
        %v547 = vpack.c.b16 %v493, %v491
        %v548 = vpack.c.b16 %v496, %v494
        %v549 = vpack.c.b16 %v497, %v495
        %v550 = vpack.c.b16 %v500, %v498
        %v551 = vpack.c.b16 %v501, %v499
        %v552 = vpack.c.b16 %v504, %v502
        %v553 = vpack.c.b16 %v505, %v503
        %v554 = vpack.c.b16 %v508, %v506
        %v555 = vpack.c.b16 %v509, %v507
        %v556 = vpack.c.b16 %v512, %v510
        %v557 = vpack.c.b16 %v513, %v511
        %v558 = vpack.c.b16 %v516, %v514
        %v559 = vpack.c.b16 %v517, %v515
        %v560 = vpack.c.b16 %v520, %v518
        %v561 = vpack.c.b16 %v521, %v519
        %v562 = vpack.c.b16 %v524, %v522
        %v563 = vpack.c.b16 %v525, %v523
        %v564 = vpack.c.b16 %v528, %v526
        %v565 = vpack.c.b16 %v529, %v527
        %v566 = vpack.c.b16 %v532, %v530
        %v567 = vpack.c.b16 %v533, %v531
        %v568 = vpack.c.b16 %v536, %v534
        %v569 = vpack.c.b16 %v537, %v535
        %v603 = vlaneseq
        %v604 = vshrl.u32 %v603, 7
        %v605 = vsub.s32 0, %v604
        %v606 = vrot.slane %v439, %v605
        %v607 = vlaneseq
        %v608 = vshrl.u32 %v607, 7
        %v609 = vsub.s32 1, %v608
        %v610 = vrot.slane %v439, %v609
        %613 = vmatprep.subr.bf16.mxu0 %v539
        %614 = vmatpush1.bf16.msra.mxu0 %v538
        %615 = vmatprep.subr.bf16.mxu0 %v541
        %616 = vmatpush1.bf16.msra.mxu0 %v540
        %617 = vmatprep.subr.bf16.mxu0 %v543
        %618 = vmatpush1.bf16.msra.mxu0 %v542
        %619 = vmatprep.subr.bf16.mxu0 %v545
        %620 = vmatpush1.bf16.msra.mxu0 %v544
        %621 = vmatprep.subr.bf16.mxu0 %v547
        %622 = vmatpush1.bf16.msra.mxu0 %v546
        %623 = vmatprep.subr.bf16.mxu0 %v549
        %624 = vmatpush1.bf16.msra.mxu0 %v548
        %625 = vmatprep.subr.bf16.mxu0 %v551
        %626 = vmatpush1.bf16.msra.mxu0 %v550
        %627 = vmatprep.subr.bf16.mxu0 %v553
        %628 = vmatpush1.bf16.msra.mxu0 %v552
        %629 = vmatprep.subr.bf16.mxu0 %v555
        %630 = vmatpush1.bf16.msra.mxu0 %v554
        %631 = vmatprep.subr.bf16.mxu0 %v557
        %632 = vmatpush1.bf16.msra.mxu0 %v556
        %633 = vmatprep.subr.bf16.mxu0 %v559
        %634 = vmatpush1.bf16.msra.mxu0 %v558
        %635 = vmatprep.subr.bf16.mxu0 %v561
        %636 = vmatpush1.bf16.msra.mxu0 %v560
        %637 = vmatprep.subr.bf16.mxu0 %v563
        %638 = vmatpush1.bf16.msra.mxu0 %v562
        %639 = vmatprep.subr.bf16.mxu0 %v565
        %640 = vmatpush1.bf16.msra.mxu0 %v564
        %641 = vmatprep.subr.bf16.mxu0 %v567
        %642 = vmatpush1.bf16.msra.mxu0 %v566
        %643 = vmatprep.subr.bf16.mxu0 %v569
        %644 = vmatpush1.bf16.msra.mxu0 %v568
        %645 = vmatprep.mubr.bf16.mxu0 %v441
        %646 = vmatmul.mubr.bf16.gmra.mrb[0].mxu0 %v440
        %v647 = vpop.f32.mrb[0].mxu0
        %v648 = vadd.f32 %v606, %v647
        %v649 = vpop.f32.mrb[0].mxu0
        %v650 = vadd.f32 %v610, %v649
        %v651 = vpop.f32.mrb[0].mxu0
        %v652 = vpop.f32.mrb[0].mxu0
        %653 = vdwg.mxu0
        %v654 = vadd.f32 %v648, %v650
        %v655 = vsub.f32 0.0, %v654
        %v656 = vmul.f32 %v655, 1.442695
        %v657 = vpow.pop %v656
        %v658 = vadd.f32 %v657, 1.0
        %v659 = vrcp.pop %v658
        %661 = vrot.lane.b32.xlu0 %v650, 64
        %v662 = vpop.permute.xlu0 %661
        %v664 = vmul.f32 %v659, %v662
        %666 = vrot.lane.b32.xlu0 %v664, 64
        %v667 = vpop.permute.xlu0 %666
        %v669 = vadd.f32 %v648, %v667
        %v670 = vtanh.pop %v669
        %v671 = vsub.f32 1.0, %v659
        %673 = vrot.lane.b32.xlu0 %v670, 96
        %v674 = vpop.permute.xlu0 %673
        %v676 = vmul.f32 %v671, %v674
        %678 = vrot.lane.b32.xlu0 %v242, 32
        %v679 = vpop.permute.xlu0 %678
        %v681 = vmul.f32 %v659, %v679
        %v682 = vadd.f32 %v676, %v681
        %684 = vrot.lane.b32.xlu0 %v682, 96
        %v685 = vpop.permute.xlu0 %684
        %vm687 = vcmask 253952
        %688 = vst.msk [vmem:[#allocation2] sm:$0x1] %vm687, %v685
        %v689 = vld [vmem:[#allocation2] sm:$0x1]
        %v690 = vld [vmem:[#allocation3 + $0x190] sm:$0xff]
        %v691 = vld [vmem:[#allocation3 + $0x198] sm:$0xff]
        %v692 = vld [vmem:[#allocation3 + $0x1a0] sm:$0xff]
        %v693 = vld [vmem:[#allocation3 + $0x1a8] sm:$0xff]
        %v694 = vld [vmem:[#allocation3 + $0x1b0] sm:$0xff]
        %v695 = vld [vmem:[#allocation3 + $0x1b8] sm:$0xff]
        %v696 = vld [vmem:[#allocation3 + $0x1c0] sm:$0xff]
        %v697 = vld [vmem:[#allocation3 + $0x1c8] sm:$0xff]
        %v698 = vld [vmem:[#allocation3 + $0x1d0] sm:$0xff]
        %v699 = vld [vmem:[#allocation3 + $0x1d8] sm:$0xff]
        %v700 = vld [vmem:[#allocation3 + $0x1e0] sm:$0xff]
        %v701 = vld [vmem:[#allocation3 + $0x1e8] sm:$0xff]
        %v702 = vld [vmem:[#allocation3 + $0x1f0] sm:$0xff]
        %v703 = vld [vmem:[#allocation3 + $0x1f8] sm:$0xff]
        %v704 = vld [vmem:[#allocation3 + $0x200] sm:$0xff]
        %v705 = vld [vmem:[#allocation3 + $0x208] sm:$0xff]
        %v706 = vld [vmem:[#allocation3 + $0x210] sm:$0xff]
        %v707 = vld [vmem:[#allocation3 + $0x218] sm:$0xff]
        %v708 = vld [vmem:[#allocation3 + $0x220] sm:$0xff]
        %v709 = vld [vmem:[#allocation3 + $0x228] sm:$0xff]
        %v710 = vld [vmem:[#allocation3 + $0x230] sm:$0xff]
        %v711 = vld [vmem:[#allocation3 + $0x238] sm:$0xff]
        %v712 = vld [vmem:[#allocation3 + $0x240] sm:$0xff]
        %v713 = vld [vmem:[#allocation3 + $0x248] sm:$0xff]
        %v714 = vld [vmem:[#allocation3 + $0x250] sm:$0xff]
        %v715 = vld [vmem:[#allocation3 + $0x258] sm:$0xff]
        %v716 = vld [vmem:[#allocation3 + $0x260] sm:$0xff]
        %v717 = vld [vmem:[#allocation3 + $0x268] sm:$0xff]
        %v718 = vld [vmem:[#allocation3 + $0x270] sm:$0xff]
        %v719 = vld [vmem:[#allocation3 + $0x278] sm:$0xff]
        %v720 = vld [vmem:[#allocation3 + $0x280] sm:$0xff]
        %v721 = vld [vmem:[#allocation3 + $0x288] sm:$0xff]
        %s722 = scalar_lea.vmem %s2, 3
        %v723 = vld [vmem:[%s722] ss:$8 sm:$0x3]
        %v724 = vpack.c.bf16 %v689, %v689
        %v725 = vpack.c.bf16 %v243, %v243
        %v758 = vunpack.c.l.b16 %v690
        %v759 = vunpack.c.h.b16 %v690
        %v760 = vunpack.c.l.b16 %v691
        %v761 = vunpack.c.h.b16 %v691
        %v762 = vunpack.c.l.b16 %v692
        %v763 = vunpack.c.h.b16 %v692
        %v764 = vunpack.c.l.b16 %v693
        %v765 = vunpack.c.h.b16 %v693
        %v766 = vunpack.c.l.b16 %v694
        %v767 = vunpack.c.h.b16 %v694
        %v768 = vunpack.c.l.b16 %v695
        %v769 = vunpack.c.h.b16 %v695
        %v770 = vunpack.c.l.b16 %v696
        %v771 = vunpack.c.h.b16 %v696
        %v772 = vunpack.c.l.b16 %v697
        %v773 = vunpack.c.h.b16 %v697
        %v774 = vunpack.c.l.b16 %v698
        %v775 = vunpack.c.h.b16 %v698
        %v776 = vunpack.c.l.b16 %v699
        %v777 = vunpack.c.h.b16 %v699
        %v778 = vunpack.c.l.b16 %v700
        %v779 = vunpack.c.h.b16 %v700
        %v780 = vunpack.c.l.b16 %v701
        %v781 = vunpack.c.h.b16 %v701
        %v782 = vunpack.c.l.b16 %v702
        %v783 = vunpack.c.h.b16 %v702
        %v784 = vunpack.c.l.b16 %v703
        %v785 = vunpack.c.h.b16 %v703
        %v786 = vunpack.c.l.b16 %v704
        %v787 = vunpack.c.h.b16 %v704
        %v788 = vunpack.c.l.b16 %v705
        %v789 = vunpack.c.h.b16 %v705
        %v790 = vunpack.c.l.b16 %v706
        %v791 = vunpack.c.h.b16 %v706
        %v792 = vunpack.c.l.b16 %v707
        %v793 = vunpack.c.h.b16 %v707
        %v794 = vunpack.c.l.b16 %v708
        %v795 = vunpack.c.h.b16 %v708
        %v796 = vunpack.c.l.b16 %v709
        %v797 = vunpack.c.h.b16 %v709
        %v798 = vunpack.c.l.b16 %v710
        %v799 = vunpack.c.h.b16 %v710
        %v800 = vunpack.c.l.b16 %v711
        %v801 = vunpack.c.h.b16 %v711
        %v802 = vunpack.c.l.b16 %v712
        %v803 = vunpack.c.h.b16 %v712
        %v804 = vunpack.c.l.b16 %v713
        %v805 = vunpack.c.h.b16 %v713
        %v806 = vunpack.c.l.b16 %v714
        %v807 = vunpack.c.h.b16 %v714
        %v808 = vunpack.c.l.b16 %v715
        %v809 = vunpack.c.h.b16 %v715
        %v810 = vunpack.c.l.b16 %v716
        %v811 = vunpack.c.h.b16 %v716
        %v812 = vunpack.c.l.b16 %v717
        %v813 = vunpack.c.h.b16 %v717
        %v814 = vunpack.c.l.b16 %v718
        %v815 = vunpack.c.h.b16 %v718
        %v816 = vunpack.c.l.b16 %v719
        %v817 = vunpack.c.h.b16 %v719
        %v818 = vunpack.c.l.b16 %v720
        %v819 = vunpack.c.h.b16 %v720
        %v820 = vunpack.c.l.b16 %v721
        %v821 = vunpack.c.h.b16 %v721
        %v822 = vpack.c.b16 %v760, %v758
        %v823 = vpack.c.b16 %v761, %v759
        %v824 = vpack.c.b16 %v764, %v762
        %v825 = vpack.c.b16 %v765, %v763
        %v826 = vpack.c.b16 %v768, %v766
        %v827 = vpack.c.b16 %v769, %v767
        %v828 = vpack.c.b16 %v772, %v770
        %v829 = vpack.c.b16 %v773, %v771
        %v830 = vpack.c.b16 %v776, %v774
        %v831 = vpack.c.b16 %v777, %v775
        %v832 = vpack.c.b16 %v780, %v778
        %v833 = vpack.c.b16 %v781, %v779
        %v834 = vpack.c.b16 %v784, %v782
        %v835 = vpack.c.b16 %v785, %v783
        %v836 = vpack.c.b16 %v788, %v786
        %v837 = vpack.c.b16 %v789, %v787
        %v838 = vpack.c.b16 %v792, %v790
        %v839 = vpack.c.b16 %v793, %v791
        %v840 = vpack.c.b16 %v796, %v794
        %v841 = vpack.c.b16 %v797, %v795
        %v842 = vpack.c.b16 %v800, %v798
        %v843 = vpack.c.b16 %v801, %v799
        %v844 = vpack.c.b16 %v804, %v802
        %v845 = vpack.c.b16 %v805, %v803
        %v846 = vpack.c.b16 %v808, %v806
        %v847 = vpack.c.b16 %v809, %v807
        %v848 = vpack.c.b16 %v812, %v810
        %v849 = vpack.c.b16 %v813, %v811
        %v850 = vpack.c.b16 %v816, %v814
        %v851 = vpack.c.b16 %v817, %v815
        %v852 = vpack.c.b16 %v820, %v818
        %v853 = vpack.c.b16 %v821, %v819
        %v887 = vlaneseq
        %v888 = vshrl.u32 %v887, 7
        %v889 = vsub.s32 0, %v888
        %v890 = vrot.slane %v723, %v889
        %v891 = vlaneseq
        %v892 = vshrl.u32 %v891, 7
        %v893 = vsub.s32 1, %v892
        %v894 = vrot.slane %v723, %v893
        %897 = vmatprep.subr.bf16.mxu0 %v823
        %898 = vmatpush1.bf16.msra.mxu0 %v822
        %899 = vmatprep.subr.bf16.mxu0 %v825
        %900 = vmatpush1.bf16.msra.mxu0 %v824
        %901 = vmatprep.subr.bf16.mxu0 %v827
        %902 = vmatpush1.bf16.msra.mxu0 %v826
        %903 = vmatprep.subr.bf16.mxu0 %v829
        %904 = vmatpush1.bf16.msra.mxu0 %v828
        %905 = vmatprep.subr.bf16.mxu0 %v831
        %906 = vmatpush1.bf16.msra.mxu0 %v830
        %907 = vmatprep.subr.bf16.mxu0 %v833
        %908 = vmatpush1.bf16.msra.mxu0 %v832
        %909 = vmatprep.subr.bf16.mxu0 %v835
        %910 = vmatpush1.bf16.msra.mxu0 %v834
        %911 = vmatprep.subr.bf16.mxu0 %v837
        %912 = vmatpush1.bf16.msra.mxu0 %v836
        %913 = vmatprep.subr.bf16.mxu0 %v839
        %914 = vmatpush1.bf16.msra.mxu0 %v838
        %915 = vmatprep.subr.bf16.mxu0 %v841
        %916 = vmatpush1.bf16.msra.mxu0 %v840
        %917 = vmatprep.subr.bf16.mxu0 %v843
        %918 = vmatpush1.bf16.msra.mxu0 %v842
        %919 = vmatprep.subr.bf16.mxu0 %v845
        %920 = vmatpush1.bf16.msra.mxu0 %v844
        %921 = vmatprep.subr.bf16.mxu0 %v847
        %922 = vmatpush1.bf16.msra.mxu0 %v846
        %923 = vmatprep.subr.bf16.mxu0 %v849
        %924 = vmatpush1.bf16.msra.mxu0 %v848
        %925 = vmatprep.subr.bf16.mxu0 %v851
        %926 = vmatpush1.bf16.msra.mxu0 %v850
        %927 = vmatprep.subr.bf16.mxu0 %v853
        %928 = vmatpush1.bf16.msra.mxu0 %v852
        %929 = vmatprep.mubr.bf16.mxu0 %v725
        %930 = vmatmul.mubr.bf16.gmra.mrb[0].mxu0 %v724
        %v931 = vpop.f32.mrb[0].mxu0
        %v932 = vadd.f32 %v890, %v931
        %v933 = vpop.f32.mrb[0].mxu0
        %v934 = vadd.f32 %v894, %v933
        %v935 = vpop.f32.mrb[0].mxu0
        %v936 = vpop.f32.mrb[0].mxu0
        %937 = vdwg.mxu0
        %v938 = vadd.f32 %v932, %v934
        %v939 = vsub.f32 0.0, %v938
        %v940 = vmul.f32 %v939, 1.442695
        %v941 = vpow.pop %v940
        %v942 = vadd.f32 %v941, 1.0
        %v943 = vrcp.pop %v942
        %945 = vrot.lane.b32.xlu0 %v934, 64
        %v946 = vpop.permute.xlu0 %945
        %v948 = vmul.f32 %v943, %v946
        %950 = vrot.lane.b32.xlu0 %v948, 64
        %v951 = vpop.permute.xlu0 %950
        %v953 = vadd.f32 %v932, %v951
        %v954 = vtanh.pop %v953
        %v955 = vsub.f32 1.0, %v943
        %957 = vrot.lane.b32.xlu0 %v954, 96
        %v958 = vpop.permute.xlu0 %957
        %v960 = vmul.f32 %v955, %v958
        %962 = vrot.lane.b32.xlu0 %v243, 32
        %v963 = vpop.permute.xlu0 %962
        %v965 = vmul.f32 %v943, %v963
        %v966 = vadd.f32 %v960, %v965
        %968 = vrot.lane.b32.xlu0 %v966, 96
        %v969 = vpop.permute.xlu0 %968
        %971 = vst.msk [vmem:[#allocation2 + $0x1] sm:$0x1] %vm687, %v969
        %v972 = vpack.c.bf16 %v966, %v966
        %v973 = vld [vmem:[#allocation3 + $0x290] sm:$0xf]
        %v974 = vld [vmem:[#allocation3 + $0x298] sm:$0xf]
        %v975 = vld [vmem:[#allocation3 + $0x2a0] sm:$0xf]
        %v976 = vld [vmem:[#allocation3 + $0x2a8] sm:$0xf]
        %v977 = vld [vmem:[%s2 + $0x4] ss:$0 sm:$0xff]
        %979 = vrot.lane.b32.xlu0 %v972, 96
        %v980 = vpop.permute.xlu0 %979
        %v985 = vunpack.c.l.b16 %v973
        %v986 = vunpack.c.l.b16 %v974
        %v987 = vunpack.c.l.b16 %v975
        %v988 = vunpack.c.l.b16 %v976
        %v989 = vpack.c.b16 %v986, %v985
        %v990 = vpack.c.b16 %v988, %v987
        %vm993 = vcmask 261120
        %v995 = vsel %vm993, %v980, 0
        %997 = vmatprep.subr.bf16.mxu0 0
        %998 = vmatpush1.bf16.msra.mxu0 %v989
        %999 = vmatprep.subr.bf16.mxu0 0
        %1000 = vmatpush1.bf16.msra.mxu0 %v990
        %1001 = vmatprep.subr.bf16.mxu0 0
        %1002 = vmatpush1.bf16.msra.mxu0 0
        %1003 = vmatprep.subr.bf16.mxu0 0
        %1004 = vmatpush1.bf16.msra.mxu0 0
        %1005 = vmatprep.subr.bf16.mxu0 0
        %1006 = vmatpush1.bf16.msra.mxu0 0
        %1007 = vmatprep.subr.bf16.mxu0 0
        %1008 = vmatpush1.bf16.msra.mxu0 0
        %1009 = vmatprep.subr.bf16.mxu0 0
        %1010 = vmatpush1.bf16.msra.mxu0 0
        %1011 = vmatprep.subr.bf16.mxu0 0
        %1012 = vmatpush1.bf16.msra.mxu0 0
        %1013 = vmatprep.subr.bf16.mxu0 0
        %1014 = vmatpush1.bf16.msra.mxu0 0
        %1015 = vmatprep.subr.bf16.mxu0 0
        %1016 = vmatpush1.bf16.msra.mxu0 0
        %1017 = vmatprep.subr.bf16.mxu0 0
        %1018 = vmatpush1.bf16.msra.mxu0 0
        %1019 = vmatprep.subr.bf16.mxu0 0
        %1020 = vmatpush1.bf16.msra.mxu0 0
        %1021 = vmatprep.subr.bf16.mxu0 0
        %1022 = vmatpush1.bf16.msra.mxu0 0
        %1023 = vmatprep.subr.bf16.mxu0 0
        %1024 = vmatpush1.bf16.msra.mxu0 0
        %1025 = vmatprep.subr.bf16.mxu0 0
        %1026 = vmatpush1.bf16.msra.mxu0 0
        %1027 = vmatprep.subr.bf16.mxu0 0
        %1028 = vmatpush1.bf16.msra.mxu0 0
        %1029 = vmatprep.mubr.bf16.mxu0 0
        %1030 = vmatmul.mubr.bf16.gmra.mrb[0].mxu0 %v995
        %v1031 = vpop.f32.mrb[0].mxu0
        %v1032 = vadd.f32 %v977, %v1031
        %v1033 = vpop.f32.mrb[0].mxu0
        %v1034 = vpop.f32.mrb[0].mxu0
        %v1035 = vpop.f32.mrb[0].mxu0
        %1036 = vdwg.mxu0
        %v1037 = vmax.f32 %v1032, 0.0
        %v1038 = vpack.c.bf16 %v1037, %v1037
        %v1039 = vld [vmem:[#allocation3 + $0x2b0] sm:$0xf]
        %v1040 = vld [vmem:[#allocation3 + $0x2b8] sm:$0xf]
        %v1041 = vld [vmem:[#allocation3 + $0x2c0] sm:$0xf]
        %v1042 = vld [vmem:[#allocation3 + $0x2c8] sm:$0xf]
        %v1043 = vld [vmem:[%s2 + $0x5] ss:$0 sm:$0xff]
        %v1048 = vunpack.c.l.b16 %v1039
        %v1049 = vunpack.c.l.b16 %v1040
        %v1050 = vunpack.c.l.b16 %v1041
        %v1051 = vunpack.c.l.b16 %v1042
        %v1052 = vpack.c.b16 %v1049, %v1048
        %v1053 = vpack.c.b16 %v1051, %v1050
        %v1057 = vsel %vm993, %v1038, 0
        %1059 = vmatprep.subr.bf16.mxu0 0
        %1060 = vmatpush1.bf16.msra.mxu0 %v1052
        %1061 = vmatprep.subr.bf16.mxu0 0
        %1062 = vmatpush1.bf16.msra.mxu0 %v1053
        %1063 = vmatprep.subr.bf16.mxu0 0
        %1064 = vmatpush1.bf16.msra.mxu0 0
        %1065 = vmatprep.subr.bf16.mxu0 0
        %1066 = vmatpush1.bf16.msra.mxu0 0
        %1067 = vmatprep.subr.bf16.mxu0 0
        %1068 = vmatpush1.bf16.msra.mxu0 0
        %1069 = vmatprep.subr.bf16.mxu0 0
        %1070 = vmatpush1.bf16.msra.mxu0 0
        %1071 = vmatprep.subr.bf16.mxu0 0
        %1072 = vmatpush1.bf16.msra.mxu0 0
        %1073 = vmatprep.subr.bf16.mxu0 0
        %1074 = vmatpush1.bf16.msra.mxu0 0
        %1075 = vmatprep.subr.bf16.mxu0 0
        %1076 = vmatpush1.bf16.msra.mxu0 0
        %1077 = vmatprep.subr.bf16.mxu0 0
        %1078 = vmatpush1.bf16.msra.mxu0 0
        %1079 = vmatprep.subr.bf16.mxu0 0
        %1080 = vmatpush1.bf16.msra.mxu0 0
        %1081 = vmatprep.subr.bf16.mxu0 0
        %1082 = vmatpush1.bf16.msra.mxu0 0
        %1083 = vmatprep.subr.bf16.mxu0 0
        %1084 = vmatpush1.bf16.msra.mxu0 0
        %1085 = vmatprep.subr.bf16.mxu0 0
        %1086 = vmatpush1.bf16.msra.mxu0 0
        %1087 = vmatprep.subr.bf16.mxu0 0
        %1088 = vmatpush1.bf16.msra.mxu0 0
        %1089 = vmatprep.subr.bf16.mxu0 0
        %1090 = vmatpush1.bf16.msra.mxu0 0
        %1091 = vmatprep.mubr.bf16.mxu0 0
        %1092 = vmatmul.mubr.bf16.gmra.mrb[0].mxu0 %v1057
        %v1093 = vpop.f32.mrb[0].mxu0
        %v1094 = vadd.f32 %v1043, %v1093
        %v1095 = vpop.f32.mrb[0].mxu0
        %v1096 = vpop.f32.mrb[0].mxu0
        %v1097 = vpop.f32.mrb[0].mxu0
        %1098 = vdwg.mxu0
        %v1099 = vlaneseq
        %v1100 = vand.u32 %v1099, 127
        %vm1101 = vcmp.lt.s32.totalorder %v1100, 5
        %v1102 = vsel %vm1101, %v1094, -1e+30
        %vm1103 = vcmask 1040384
        %v1104 = vsel %vm1103, %v1102, -inf
        %1105 = vmax.xlane.f32.xlu0 %v1104
        %v1106 = vpop.xlane.xlu0 %1105
        %v1107 = vsub.f32 %v1102, %v1106
        %v1108 = vmul.f32 %v1107, 1.442695
        %v1109 = vpow.pop %v1108
        %v1110 = vsel %vm1101, %v1109, 0.0
        %v1111 = vsel %vm1103, %v1110, 0.0
        %1112 = vadd.xlane.f32.xlu0 %v1111
        %v1113 = vpop.xlane.xlu0 %1112
        %v1114 = vrcp.pop %v1113
        %v1115 = vmul.f32 %v1110, %v1114
        %vm1116 = vcmp.eq.s32.totalorder %v1100, 5
        %v1117 = vsel %vm1116, %v1094, 0.0
        %v1118 = vadd.f32 %v1115, %v1117
        %v1119 = vlaneseq
        %v1120 = vshrl.u32 %v1119, 7
        %v1121 = vsub.s32 0, %v1120
        %v1122 = vrot.slane %v1118, %v1121
        %1123 = vst [vmem:[%s232] sm:$0xff] %v1122
        %p1124 = scmp.eq.s32.totalorder %s18, 7
        // Predicated region
        $region45: #{policy_rollout.1} parent=35 // pred_check
          %p1125 = pneg %p1124
        $region46: #{policy_rollout.1} parent=35 // pred_check_branch
          %1127 = sbr.rel (%p1125) target = $region48
        $region47: #{policy_rollout.1} parent=35 // pred_region
          %v1128 = vld [vmem:[#allocation2] sm:$0xff]
          %1129 = vst [vmem:[%s5] sm:$0xff] %v1128
        $region48: #{policy_rollout.1} parent=35 // pred_fallthru
          _
        %p1130 = scmp.lt.s32.totalorder %s18, 7
        %s1131 = scalar_select %p1130, %s18, 7
        %s1132 = smul.addr %s1131, 8
        %s1133 = scalar_lea.vmem %s4, %s1132
        // Predicated region
        $region49: #{policy_rollout.1} parent=35 // pred_check
          %p1134 = pneg %p125
        $region50: #{policy_rollout.1} parent=35 // pred_check_branch
          %1136 = sbr.rel (%p1134) target = $region52
        $region51: #{policy_rollout.1} parent=35 // pred_region
          _
        $region52: #{policy_rollout.1} parent=35 // pred_fallthru
          _
        // Predicated region
        $region53: #{policy_rollout.1} parent=35 // pred_check
          %p1137 = pneg %p146
        $region54: #{policy_rollout.1} parent=35 // pred_check_branch
          %1139 = sbr.rel (%p1137) target = $region56
        $region55: #{policy_rollout.1} parent=35 // pred_region
          _
        $region56: #{policy_rollout.1} parent=35 // pred_fallthru
          _
        // Predicated region
        $region57: #{policy_rollout.1} parent=35 // pred_check
          %p1140 = pneg %p146
        $region58: #{policy_rollout.1} parent=35 // pred_check_branch
          %1142 = sbr.rel (%p1140) target = $region60
        $region59: #{policy_rollout.1} parent=35 // pred_region
          _
        $region60: #{policy_rollout.1} parent=35 // pred_fallthru
          _
      $region36: #{policy_rollout.1} parent=5 // pred_fallthru
        _
      %p1143 = scmp.le.s32.totalorder 2, %s13
      // Predicated region
      $region61: #{policy_rollout.1} parent=5 // pred_check
        %p1144 = pneg %p1143
      $region62: #{policy_rollout.1} parent=5 // pred_check_branch
        %1146 = sbr.rel (%p1144) target = $region64
      $region63: #{policy_rollout.1} parent=5 // pred_region
        %s1147 = ssub.s32 %s13, 2
        // Predicated region
        $region65: #{policy_rollout.1} parent=63 // pred_check
          %p1148 = pneg %p131
        $region66: #{policy_rollout.1} parent=63 // pred_check_branch
          %1150 = sbr.rel (%p1148) target = $region68
        $region67: #{policy_rollout.1} parent=63 // pred_region
          %p1151 = scmp.lt.s32.totalorder %s19, 7
          %s1152 = scalar_select %p1151, %s19, 7
          %s1153 = smul.addr %s1152, 8
          %s1154 = scalar_lea.vmem %s4, %s1153
        $region68: #{policy_rollout.1} parent=63 // pred_fallthru
          _
      $region64: #{policy_rollout.1} parent=5 // pred_fallthru
        _
    $region6: #{policy_rollout.1} parent=1 // loop_footer
      %s17 = sadd.s32 1, %s13
    $region7: #{policy_rollout.1} parent=1 // loop_footer_branch
      %12 = sbr.rel target = $region3
    $region8: #{policy_rollout.1} parent=1 // loop_exit
      _
    %1155 = vsyncpa [#allocation4], 1
    %s1156 = scalar_lea.sflag [#allocation4], 1
    %1157 = vsyncpa %s1156, 1

</llo_original>
